<compile_context>
chip_gen: v6e
topology: v6e:2x2x1
jax: 0.10.0
libtpu: 0.0.40
codegen_flags: <defaults>
</compile_context>

<pallas_src>
import math

import jax
import jax.numpy as jnp
from jax.experimental import pallas as pl
from jax.experimental.pallas import tpu as pltpu

D_MODEL = 32
D_FF = 64
N_LAYERS = 2
VOCAB = 50
EPS = 1e-5  # torch.nn.LayerNorm default eps


# ----------------------------- fused Pallas kernel -----------------------------

def _decoder_stack_kernel(x_ref, enc_ref, dbias_ref, ebias_ref,
                          wqkv_s_ref, bqkv_s_ref,
                          wq_c_ref, bq_c_ref, wkv_c_ref, bkv_c_ref,
                          w1_ref, b1_ref, w2_ref, b2_ref,
                          gamma_ref, beta_ref,
                          o_ref):
    """Full N_LAYERS decoder stack for one batch element, entirely in VMEM."""
    x = x_ref[0]            # (S, D)     token+pos embeddings
    enc = enc_ref[0]        # (S_enc, D)
    dbias = dbias_ref[0]    # (S, S)     additive bias (0 keep / -1e9 masked)
    ebias = ebias_ref[0]    # (S, S_enc)
    gamma = gamma_ref[...]  # (1, D)
    beta = beta_ref[...]    # (1, D)

    inv_sqrt_d = 1.0 / math.sqrt(D_MODEL)

    def layer_norm(y):
        mean = jnp.mean(y, axis=-1, keepdims=True)
        c = y - mean
        var = jnp.mean(c * c, axis=-1, keepdims=True)
        return (c * jax.lax.rsqrt(var + EPS)) * gamma + beta

    def sdpa(q, k, v, bias):
        # scores = q @ k^T without materializing a transpose (contract last dims).
        s = jax.lax.dot_general(q, k, (((1,), (1,)), ((), ())),
                                preferred_element_type=jnp.float32)
        s = s * inv_sqrt_d + bias
        m = jnp.max(s, axis=-1, keepdims=True)
        p = jnp.exp(s - m)
        inv_l = pl.reciprocal(jnp.sum(p, axis=-1, keepdims=True), approx=True)
        return jnp.dot(p * inv_l, v, preferred_element_type=jnp.float32)

    # Cross-attention K/V: encoder output and the shared weights are
    # layer-invariant, so project once and reuse in every layer.
    kvc = jnp.dot(enc, wkv_c_ref[...],
                  preferred_element_type=jnp.float32) + bkv_c_ref[...]
    kc = kvc[:, :D_MODEL]
    vc = kvc[:, D_MODEL:]

    for _ in range(N_LAYERS):  # same sub-module weights reused every layer
        # ---- self attention (single fused QKV projection) ----
        qkv = jnp.dot(x, wqkv_s_ref[...],
                      preferred_element_type=jnp.float32) + bqkv_s_ref[...]
        q = qkv[:, :D_MODEL]
        k = qkv[:, D_MODEL:2 * D_MODEL]
        v = qkv[:, 2 * D_MODEL:]
        sa = sdpa(q, k, v, dbias)
        ln1 = layer_norm(sa + x)

        # ---- encoder-decoder (cross) attention ----
        qc = jnp.dot(ln1, wq_c_ref[...],
                     preferred_element_type=jnp.float32) + bq_c_ref[...]
        eda = sdpa(qc, kc, vc, ebias)
        ln2 = layer_norm(eda + ln1)

        # ---- pointwise FFN on the cross-attention output (as in the module) ----
        h = jnp.dot(eda, w1_ref[...],
                    preferred_element_type=jnp.float32) + b1_ref[...]
        h = jnp.maximum(h, 0.0)
        ffn_out = jnp.dot(h, w2_ref[...],
                          preferred_element_type=jnp.float32) + b2_ref[...]
        x = layer_norm(ffn_out + ln2)

    o_ref[0] = x
    # TODO(synk): output last dim stays 32 (not lane-dense); padding D_MODEL to
    # 128 (or reshaping to a (1, S*D) slab) would trade masked vst for an XLU
    # relayout and is not worth it at this problem size.


# ----------------------------- wrapper -----------------------------

@jax.jit
def decoder_forward(params, decoder_input_ids, encoder_output,
                    encoder_attn_mask, decoder_attn_mask):
    B, S = decoder_input_ids.shape
    S_enc = encoder_output.shape[1]

    # Glue (plain JAX, once per forward): token-embedding gather + sinusoidal
    # positional encoding, and conversion of 0/1 masks to additive biases.
    # TODO(synk): the data-dependent embedding gather is left outside the
    # kernel; fusing it would need an in-kernel gather over a VMEM table.
    x = jnp.take(params["tok_emb"], decoder_input_ids, axis=0)
    x = x + sinusoidal_pos_encoding(S, D_MODEL)[None, :, :]
    dec_bias = (decoder_attn_mask.astype(jnp.float32) - 1.0) * 1e9
    enc_bias = (encoder_attn_mask.astype(jnp.float32) - 1.0) * 1e9

    weights = (params["wqkv_s"], params["bqkv_s"],
               params["wq_c"], params["bq_c"],
               params["wkv_c"], params["bkv_c"],
               params["w1"], params["b1"], params["w2"], params["b2"],
               params["gamma"], params["beta"])

    in_specs = [
        pl.BlockSpec((1, S, D_MODEL), lambda b: (b, 0, 0)),      # x
        pl.BlockSpec((1, S_enc, D_MODEL), lambda b: (b, 0, 0)),  # encoder output
        pl.BlockSpec((1, S, S), lambda b: (b, 0, 0)),            # decoder bias
        pl.BlockSpec((1, S, S_enc), lambda b: (b, 0, 0)),        # encoder bias
    ] + [pl.BlockSpec(w.shape, lambda b: (0, 0)) for w in weights]

    return pl.pallas_call(
        _decoder_stack_kernel,
        out_shape=jax.ShapeDtypeStruct((B, S, D_MODEL), jnp.float32),
        grid=(B,),
        in_specs=in_specs,
        out_specs=pl.BlockSpec((1, S, D_MODEL), lambda b: (b, 0, 0)),
        compiler_params=pltpu.CompilerParams(dimension_semantics=("parallel",)),
    )(x, encoder_output, dec_bias, enc_bias, *weights)


# ----------------------------- glue / params -----------------------------

def sinusoidal_pos_encoding(seq_len, d_model):
    pos = jnp.arange(seq_len, dtype=jnp.float32)[:, None]
    i = jnp.arange(d_model)[None, :]
    angle_rates = 1.0 / jnp.power(10000.0, (2.0 * (i // 2)) / d_model)
    angles = pos * angle_rates
    return jnp.where(i % 2 == 0, jnp.sin(angles), jnp.cos(angles)).astype(jnp.float32)


def init_params(key):
    ks = jax.random.split(key, 16)
    scale = 0.02

    def w(k, shape):
        return (scale * jax.random.normal(k, shape)).astype(jnp.float32)

    wq_s, wk_s, wv_s = (w(ks[1], (D_MODEL, D_MODEL)),
                        w(ks[2], (D_MODEL, D_MODEL)),
                        w(ks[3], (D_MODEL, D_MODEL)))
    wq_c, wk_c, wv_c = (w(ks[4], (D_MODEL, D_MODEL)),
                        w(ks[5], (D_MODEL, D_MODEL)),
                        w(ks[6], (D_MODEL, D_MODEL)))

    return {
        "tok_emb": w(ks[0], (VOCAB, D_MODEL)),
        # self-attention projections, pre-concatenated for one fused matmul
        "wqkv_s": jnp.concatenate([wq_s, wk_s, wv_s], axis=1),      # (D, 3D)
        "bqkv_s": w(ks[9], (1, 3 * D_MODEL)),
        # encoder-decoder (cross) attention: Q separate, K/V concatenated
        "wq_c": wq_c, "bq_c": w(ks[10], (1, D_MODEL)),
        "wkv_c": jnp.concatenate([wk_c, wv_c], axis=1),             # (D, 2D)
        "bkv_c": w(ks[11], (1, 2 * D_MODEL)),
        # FFN
        "w1": w(ks[7], (D_MODEL, D_FF)), "b1": w(ks[12], (1, D_FF)),
        "w2": w(ks[8], (D_FF, D_MODEL)), "b2": w(ks[13], (1, D_MODEL)),
        # shared LayerNorm (fresh nn.LayerNorm init)
        "gamma": jnp.ones((1, D_MODEL), jnp.float32),
        "beta": jnp.zeros((1, D_MODEL), jnp.float32),
    }


# ----------------------------- pure-JAX reference -----------------------------

def decoder_reference(params, decoder_input_ids, encoder_output,
                      encoder_attn_mask, decoder_attn_mask):
    """Plain-JAX mirror of the PyTorch Decoder.forward (exact softmax / LN)."""
    B, S = decoder_input_ids.shape
    x = jnp.take(params["tok_emb"], decoder_input_ids, axis=0)
    x = x + sinusoidal_pos_encoding(S, D_MODEL)[None, :, :]
    dbias = (decoder_attn_mask.astype(jnp.float32) - 1.0) * 1e9
    ebias = (encoder_attn_mask.astype(jnp.float32) - 1.0) * 1e9

    def ln(y):
        m = jnp.mean(y, axis=-1, keepdims=True)
        v = jnp.mean((y - m) ** 2, axis=-1, keepdims=True)
        return (y - m) / jnp.sqrt(v + EPS) * params["gamma"] + params["beta"]

    def sdpa(q, k, v, bias):
        s = jnp.einsum("bqd,bkd->bqk", q, k) / math.sqrt(D_MODEL) + bias
        p = jax.nn.softmax(s, axis=-1)
        return jnp.einsum("bqk,bkd->bqd", p, v)

    kvc = jnp.einsum("bsd,de->bse", encoder_output, params["wkv_c"]) + params["bkv_c"]
    kc, vc = kvc[..., :D_MODEL], kvc[..., D_MODEL:]

    for _ in range(N_LAYERS):
        qkv = jnp.einsum("bsd,de->bse", x, params["wqkv_s"]) + params["bqkv_s"]
        q, k, v = (qkv[..., :D_MODEL], qkv[..., D_MODEL:2 * D_MODEL],
                   qkv[..., 2 * D_MODEL:])
        sa = sdpa(q, k, v, dbias)
        ln1 = ln(sa + x)
        qc = jnp.einsum("bsd,de->bse", ln1, params["wq_c"]) + params["bq_c"]
        eda = sdpa(qc, kc, vc, ebias)
        ln2 = ln(eda + ln1)
        h = jnp.maximum(jnp.einsum("bsd,df->bsf", eda, params["w1"]) + params["b1"], 0.0)
        ffn_out = jnp.einsum("bsf,fd->bsd", h, params["w2"]) + params["b2"]
        x = ln(ffn_out + ln2)
    return x


if __name__ == "__main__":
    key = jax.random.PRNGKey(0)
    k_ids, k_enc, k_params = jax.random.split(key, 3)

    B, S_DEC, S_ENC = 2, 8, 8
    decoder_input_ids = jax.random.randint(k_ids, (B, S_DEC), 0, VOCAB)
    encoder_output = jax.random.normal(k_enc, (B, S_ENC, D_MODEL), jnp.float32)
    # encoder mask: attend everywhere; decoder mask: causal
    encoder_attn_mask = jnp.ones((B, S_DEC, S_ENC), jnp.float32)
    causal = jnp.tril(jnp.ones((S_DEC, S_DEC), jnp.float32))
    decoder_attn_mask = jnp.broadcast_to(causal, (B, S_DEC, S_DEC))

    params = init_params(k_params)

    out = decoder_forward(params, decoder_input_ids, encoder_output,
                          encoder_attn_mask, decoder_attn_mask)
    out = jax.block_until_ready(out)

    ref = decoder_reference(params, decoder_input_ids, encoder_output,
                            encoder_attn_mask, decoder_attn_mask)
    assert out.shape == (B, S_DEC, D_MODEL)
    assert bool(jnp.all(jnp.isfinite(out)))
    # Loose tolerance: kernel uses EUP approx-reciprocal for the softmax denom.
    assert bool(jnp.allclose(out, ref, rtol=3e-2, atol=3e-2))
    print("KERNEL_OK")
</pallas_src>

<mosaic_0001>
module attributes {stable_mosaic.version = 11 : i64} {
  func.func @_decoder_stack_kernel(%arg0: i32, %arg1: memref<1x8x32xf32, #tpu.memory_space<vmem>>, %arg2: memref<1x8x32xf32, #tpu.memory_space<vmem>>, %arg3: memref<1x8x8xf32, #tpu.memory_space<vmem>>, %arg4: memref<1x8x8xf32, #tpu.memory_space<vmem>>, %arg5: memref<32x96xf32, #tpu.memory_space<vmem>>, %arg6: memref<1x96xf32, #tpu.memory_space<vmem>>, %arg7: memref<32x32xf32, #tpu.memory_space<vmem>>, %arg8: memref<1x32xf32, #tpu.memory_space<vmem>>, %arg9: memref<32x64xf32, #tpu.memory_space<vmem>>, %arg10: memref<1x64xf32, #tpu.memory_space<vmem>>, %arg11: memref<32x64xf32, #tpu.memory_space<vmem>>, %arg12: memref<1x64xf32, #tpu.memory_space<vmem>>, %arg13: memref<64x32xf32, #tpu.memory_space<vmem>>, %arg14: memref<1x32xf32, #tpu.memory_space<vmem>>, %arg15: memref<1x32xf32, #tpu.memory_space<vmem>>, %arg16: memref<1x32xf32, #tpu.memory_space<vmem>>, %arg17: memref<1x8x32xf32, #tpu.memory_space<vmem>>) attributes {dimension_semantics = [#tpu.dimension_semantics<parallel>], iteration_bounds = array<i64: 2>, scalar_prefetch = 0 : i64, scratch_operands = 0 : i64, tpu.core_type = #tpu.core_type<tc>, window_params = [{transform_indices = @transform_0, window_bounds = array<i64: 1, 8, 32>}, {transform_indices = @transform_1, window_bounds = array<i64: 1, 8, 32>}, {transform_indices = @transform_2, window_bounds = array<i64: 1, 8, 8>}, {transform_indices = @transform_3, window_bounds = array<i64: 1, 8, 8>}, {pipeline_mode = #tpu.pipeline_mode<synchronous>, transform_indices = @transform_4, window_bounds = array<i64: 32, 96>}, {pipeline_mode = #tpu.pipeline_mode<synchronous>, transform_indices = @transform_5, window_bounds = array<i64: 1, 96>}, {pipeline_mode = #tpu.pipeline_mode<synchronous>, transform_indices = @transform_6, window_bounds = array<i64: 32, 32>}, {pipeline_mode = #tpu.pipeline_mode<synchronous>, transform_indices = @transform_7, window_bounds = array<i64: 1, 32>}, {pipeline_mode = #tpu.pipeline_mode<synchronous>, transform_indices = @transform_8, window_bounds = array<i64: 32, 64>}, {pipeline_mode = #tpu.pipeline_mode<synchronous>, transform_indices = @transform_9, window_bounds = array<i64: 1, 64>}, {pipeline_mode = #tpu.pipeline_mode<synchronous>, transform_indices = @transform_10, window_bounds = array<i64: 32, 64>}, {pipeline_mode = #tpu.pipeline_mode<synchronous>, transform_indices = @transform_11, window_bounds = array<i64: 1, 64>}, {pipeline_mode = #tpu.pipeline_mode<synchronous>, transform_indices = @transform_12, window_bounds = array<i64: 64, 32>}, {pipeline_mode = #tpu.pipeline_mode<synchronous>, transform_indices = @transform_13, window_bounds = array<i64: 1, 32>}, {pipeline_mode = #tpu.pipeline_mode<synchronous>, transform_indices = @transform_14, window_bounds = array<i64: 1, 32>}, {pipeline_mode = #tpu.pipeline_mode<synchronous>, transform_indices = @transform_15, window_bounds = array<i64: 1, 32>}, {transform_indices = @transform_16, window_bounds = array<i64: 1, 8, 32>}]} {
    %c0 = arith.constant 0 : index
    %c0_0 = arith.constant 0 : index
    %c0_1 = arith.constant 0 : index
    %0 = vector.load %arg1[%c0, %c0_0, %c0_1] : memref<1x8x32xf32, #tpu.memory_space<vmem>>, vector<1x8x32xf32>
    %1 = vector.shape_cast %0 : vector<1x8x32xf32> to vector<8x32xf32>
    %c0_2 = arith.constant 0 : index
    %c0_3 = arith.constant 0 : index
    %c0_4 = arith.constant 0 : index
    %2 = vector.load %arg2[%c0_2, %c0_3, %c0_4] : memref<1x8x32xf32, #tpu.memory_space<vmem>>, vector<1x8x32xf32>
    %3 = vector.shape_cast %2 : vector<1x8x32xf32> to vector<8x32xf32>
    %c0_5 = arith.constant 0 : index
    %c0_6 = arith.constant 0 : index
    %c0_7 = arith.constant 0 : index
    %4 = vector.load %arg3[%c0_5, %c0_6, %c0_7] : memref<1x8x8xf32, #tpu.memory_space<vmem>>, vector<1x8x8xf32>
    %5 = vector.shape_cast %4 : vector<1x8x8xf32> to vector<8x8xf32>
    %c0_8 = arith.constant 0 : index
    %c0_9 = arith.constant 0 : index
    %c0_10 = arith.constant 0 : index
    %6 = vector.load %arg4[%c0_8, %c0_9, %c0_10] : memref<1x8x8xf32, #tpu.memory_space<vmem>>, vector<1x8x8xf32>
    %7 = vector.shape_cast %6 : vector<1x8x8xf32> to vector<8x8xf32>
    %c0_11 = arith.constant 0 : index
    %c0_12 = arith.constant 0 : index
    %8 = vector.load %arg15[%c0_11, %c0_12] : memref<1x32xf32, #tpu.memory_space<vmem>>, vector<1x32xf32>
    %c0_13 = arith.constant 0 : index
    %c0_14 = arith.constant 0 : index
    %9 = vector.load %arg16[%c0_13, %c0_14] : memref<1x32xf32, #tpu.memory_space<vmem>>, vector<1x32xf32>
    %c0_15 = arith.constant 0 : index
    %c0_16 = arith.constant 0 : index
    %10 = vector.load %arg9[%c0_15, %c0_16] : memref<32x64xf32, #tpu.memory_space<vmem>>, vector<32x64xf32>
    %cst = arith.constant dense<0.000000e+00> : vector<8x64xf32>
    %11 = tpu.matmul %3, %10, %cst {dimension_numbers = #tpu.dot_dimension_numbers<[1], [0], [0], [1], [0, 0, 1, 1], [], []>} : vector<8x32xf32>, vector<32x64xf32>, vector<8x64xf32> -> vector<8x64xf32>
    %c0_17 = arith.constant 0 : index
    %c0_18 = arith.constant 0 : index
    %12 = vector.load %arg10[%c0_17, %c0_18] : memref<1x64xf32, #tpu.memory_space<vmem>>, vector<1x64xf32>
    %13 = vector.broadcast %12 : vector<1x64xf32> to vector<8x64xf32>
    %14 = arith.addf %11, %13 : vector<8x64xf32>
    %15 = vector.extract_strided_slice %14 {offsets = [0, 0], sizes = [8, 32], strides = [1, 1]} : vector<8x64xf32> to vector<8x32xf32>
    %16 = vector.extract_strided_slice %14 {offsets = [0, 32], sizes = [8, 32], strides = [1, 1]} : vector<8x64xf32> to vector<8x32xf32>
    %c0_19 = arith.constant 0 : index
    %c0_20 = arith.constant 0 : index
    %17 = vector.load %arg5[%c0_19, %c0_20] : memref<32x96xf32, #tpu.memory_space<vmem>>, vector<32x96xf32>
    %cst_21 = arith.constant dense<0.000000e+00> : vector<8x96xf32>
    %18 = tpu.matmul %1, %17, %cst_21 {dimension_numbers = #tpu.dot_dimension_numbers<[1], [0], [0], [1], [0, 0, 1, 1], [], []>} : vector<8x32xf32>, vector<32x96xf32>, vector<8x96xf32> -> vector<8x96xf32>
    %c0_22 = arith.constant 0 : index
    %c0_23 = arith.constant 0 : index
    %19 = vector.load %arg6[%c0_22, %c0_23] : memref<1x96xf32, #tpu.memory_space<vmem>>, vector<1x96xf32>
    %20 = vector.broadcast %19 : vector<1x96xf32> to vector<8x96xf32>
    %21 = arith.addf %18, %20 : vector<8x96xf32>
    %22 = vector.extract_strided_slice %21 {offsets = [0, 0], sizes = [8, 32], strides = [1, 1]} : vector<8x96xf32> to vector<8x32xf32>
    %23 = vector.extract_strided_slice %21 {offsets = [0, 32], sizes = [8, 32], strides = [1, 1]} : vector<8x96xf32> to vector<8x32xf32>
    %24 = vector.extract_strided_slice %21 {offsets = [0, 64], sizes = [8, 32], strides = [1, 1]} : vector<8x96xf32> to vector<8x32xf32>
    %cst_24 = arith.constant dense<0.000000e+00> : vector<8x8xf32>
    %25 = tpu.matmul %22, %23, %cst_24 {dimension_numbers = #tpu.dot_dimension_numbers<[1], [1], [0], [0], [0, 0, 1, 0], [], []>} : vector<8x32xf32>, vector<8x32xf32>, vector<8x8xf32> -> vector<8x8xf32>
    %cst_25 = arith.constant 0.176776692 : f32
    %26 = vector.broadcast %cst_25 : f32 to vector<8x8xf32>
    %27 = arith.mulf %25, %26 : vector<8x8xf32>
    %28 = arith.addf %27, %5 : vector<8x8xf32>
    %cst_26 = arith.constant dense<0xFF800000> : vector<8xf32>
    %29 = vector.multi_reduction <maximumf>, %28, %cst_26 [1] : vector<8x8xf32> to vector<8xf32>
    %30 = vector.shape_cast %29 : vector<8xf32> to vector<8x1xf32>
    %31 = vector.broadcast %30 : vector<8x1xf32> to vector<8x8xf32>
    %32 = arith.subf %28, %31 : vector<8x8xf32>
    %33 = math.exp %32 : vector<8x8xf32>
    %cst_27 = arith.constant dense<0.000000e+00> : vector<8xf32>
    %34 = vector.multi_reduction <add>, %33, %cst_27 [1] : vector<8x8xf32> to vector<8xf32>
    %35 = vector.shape_cast %34 : vector<8xf32> to vector<8x1xf32>
    %36 = tpu.reciprocal %35 {approx = true} : vector<8x1xf32> -> vector<8x1xf32>
    %37 = vector.broadcast %36 : vector<8x1xf32> to vector<8x8xf32>
    %38 = arith.mulf %33, %37 : vector<8x8xf32>
    %cst_28 = arith.constant dense<0.000000e+00> : vector<8x32xf32>
    %39 = tpu.matmul %38, %24, %cst_28 {dimension_numbers = #tpu.dot_dimension_numbers<[1], [0], [0], [1], [0, 0, 1, 1], [], []>} : vector<8x8xf32>, vector<8x32xf32>, vector<8x32xf32> -> vector<8x32xf32>
    %40 = arith.addf %39, %1 : vector<8x32xf32>
    %cst_29 = arith.constant dense<0.000000e+00> : vector<8xf32>
    %41 = vector.multi_reduction <add>, %40, %cst_29 [1] : vector<8x32xf32> to vector<8xf32>
    %42 = vector.shape_cast %41 : vector<8xf32> to vector<8x1xf32>
    %cst_30 = arith.constant 3.200000e+01 : f32
    %43 = vector.broadcast %cst_30 : f32 to vector<8x1xf32>
    %44 = arith.divf %42, %43 : vector<8x1xf32>
    %45 = vector.broadcast %44 : vector<8x1xf32> to vector<8x32xf32>
    %46 = arith.subf %40, %45 : vector<8x32xf32>
    %47 = arith.mulf %46, %46 : vector<8x32xf32>
    %cst_31 = arith.constant dense<0.000000e+00> : vector<8xf32>
    %48 = vector.multi_reduction <add>, %47, %cst_31 [1] : vector<8x32xf32> to vector<8xf32>
    %49 = vector.shape_cast %48 : vector<8xf32> to vector<8x1xf32>
    %cst_32 = arith.constant 3.200000e+01 : f32
    %50 = vector.broadcast %cst_32 : f32 to vector<8x1xf32>
    %51 = arith.divf %49, %50 : vector<8x1xf32>
    %cst_33 = arith.constant 9.99999974E-6 : f32
    %52 = vector.broadcast %cst_33 : f32 to vector<8x1xf32>
    %53 = arith.addf %51, %52 : vector<8x1xf32>
    %54 = math.rsqrt %53 : vector<8x1xf32>
    %55 = vector.broadcast %54 : vector<8x1xf32> to vector<8x32xf32>
    %56 = arith.mulf %46, %55 : vector<8x32xf32>
    %57 = vector.broadcast %8 : vector<1x32xf32> to vector<8x32xf32>
    %58 = arith.mulf %56, %57 : vector<8x32xf32>
    %59 = vector.broadcast %9 : vector<1x32xf32> to vector<8x32xf32>
    %60 = arith.addf %58, %59 : vector<8x32xf32>
    %c0_34 = arith.constant 0 : index
    %c0_35 = arith.constant 0 : index
    %61 = vector.load %arg7[%c0_34, %c0_35] : memref<32x32xf32, #tpu.memory_space<vmem>>, vector<32x32xf32>
    %cst_36 = arith.constant dense<0.000000e+00> : vector<8x32xf32>
    %62 = tpu.matmul %60, %61, %cst_36 {dimension_numbers = #tpu.dot_dimension_numbers<[1], [0], [0], [1], [0, 0, 1, 1], [], []>} : vector<8x32xf32>, vector<32x32xf32>, vector<8x32xf32> -> vector<8x32xf32>
    %c0_37 = arith.constant 0 : index
    %c0_38 = arith.constant 0 : index
    %63 = vector.load %arg8[%c0_37, %c0_38] : memref<1x32xf32, #tpu.memory_space<vmem>>, vector<1x32xf32>
    %64 = vector.broadcast %63 : vector<1x32xf32> to vector<8x32xf32>
    %65 = arith.addf %62, %64 : vector<8x32xf32>
    %cst_39 = arith.constant dense<0.000000e+00> : vector<8x8xf32>
    %66 = tpu.matmul %65, %15, %cst_39 {dimension_numbers = #tpu.dot_dimension_numbers<[1], [1], [0], [0], [0, 0, 1, 0], [], []>} : vector<8x32xf32>, vector<8x32xf32>, vector<8x8xf32> -> vector<8x8xf32>
    %cst_40 = arith.constant 0.176776692 : f32
    %67 = vector.broadcast %cst_40 : f32 to vector<8x8xf32>
    %68 = arith.mulf %66, %67 : vector<8x8xf32>
    %69 = arith.addf %68, %7 : vector<8x8xf32>
    %cst_41 = arith.constant dense<0xFF800000> : vector<8xf32>
    %70 = vector.multi_reduction <maximumf>, %69, %cst_41 [1] : vector<8x8xf32> to vector<8xf32>
    %71 = vector.shape_cast %70 : vector<8xf32> to vector<8x1xf32>
    %72 = vector.broadcast %71 : vector<8x1xf32> to vector<8x8xf32>
    %73 = arith.subf %69, %72 : vector<8x8xf32>
    %74 = math.exp %73 : vector<8x8xf32>
    %cst_42 = arith.constant dense<0.000000e+00> : vector<8xf32>
    %75 = vector.multi_reduction <add>, %74, %cst_42 [1] : vector<8x8xf32> to vector<8xf32>
    %76 = vector.shape_cast %75 : vector<8xf32> to vector<8x1xf32>
    %77 = tpu.reciprocal %76 {approx = true} : vector<8x1xf32> -> vector<8x1xf32>
    %78 = vector.broadcast %77 : vector<8x1xf32> to vector<8x8xf32>
    %79 = arith.mulf %74, %78 : vector<8x8xf32>
    %cst_43 = arith.constant dense<0.000000e+00> : vector<8x32xf32>
    %80 = tpu.matmul %79, %16, %cst_43 {dimension_numbers = #tpu.dot_dimension_numbers<[1], [0], [0], [1], [0, 0, 1, 1], [], []>} : vector<8x8xf32>, vector<8x32xf32>, vector<8x32xf32> -> vector<8x32xf32>
    %81 = arith.addf %80, %60 : vector<8x32xf32>
    %cst_44 = arith.constant dense<0.000000e+00> : vector<8xf32>
    %82 = vector.multi_reduction <add>, %81, %cst_44 [1] : vector<8x32xf32> to vector<8xf32>
    %83 = vector.shape_cast %82 : vector<8xf32> to vector<8x1xf32>
    %cst_45 = arith.constant 3.200000e+01 : f32
    %84 = vector.broadcast %cst_45 : f32 to vector<8x1xf32>
    %85 = arith.divf %83, %84 : vector<8x1xf32>
    %86 = vector.broadcast %85 : vector<8x1xf32> to vector<8x32xf32>
    %87 = arith.subf %81, %86 : vector<8x32xf32>
    %88 = arith.mulf %87, %87 : vector<8x32xf32>
    %cst_46 = arith.constant dense<0.000000e+00> : vector<8xf32>
    %89 = vector.multi_reduction <add>, %88, %cst_46 [1] : vector<8x32xf32> to vector<8xf32>
    %90 = vector.shape_cast %89 : vector<8xf32> to vector<8x1xf32>
    %cst_47 = arith.constant 3.200000e+01 : f32
    %91 = vector.broadcast %cst_47 : f32 to vector<8x1xf32>
    %92 = arith.divf %90, %91 : vector<8x1xf32>
    %cst_48 = arith.constant 9.99999974E-6 : f32
    %93 = vector.broadcast %cst_48 : f32 to vector<8x1xf32>
    %94 = arith.addf %92, %93 : vector<8x1xf32>
    %95 = math.rsqrt %94 : vector<8x1xf32>
    %96 = vector.broadcast %95 : vector<8x1xf32> to vector<8x32xf32>
    %97 = arith.mulf %87, %96 : vector<8x32xf32>
    %98 = vector.broadcast %8 : vector<1x32xf32> to vector<8x32xf32>
    %99 = arith.mulf %97, %98 : vector<8x32xf32>
    %100 = vector.broadcast %9 : vector<1x32xf32> to vector<8x32xf32>
    %101 = arith.addf %99, %100 : vector<8x32xf32>
    %c0_49 = arith.constant 0 : index
    %c0_50 = arith.constant 0 : index
    %102 = vector.load %arg11[%c0_49, %c0_50] : memref<32x64xf32, #tpu.memory_space<vmem>>, vector<32x64xf32>
    %cst_51 = arith.constant dense<0.000000e+00> : vector<8x64xf32>
    %103 = tpu.matmul %80, %102, %cst_51 {dimension_numbers = #tpu.dot_dimension_numbers<[1], [0], [0], [1], [0, 0, 1, 1], [], []>} : vector<8x32xf32>, vector<32x64xf32>, vector<8x64xf32> -> vector<8x64xf32>
    %c0_52 = arith.constant 0 : index
    %c0_53 = arith.constant 0 : index
    %104 = vector.load %arg12[%c0_52, %c0_53] : memref<1x64xf32, #tpu.memory_space<vmem>>, vector<1x64xf32>
    %105 = vector.broadcast %104 : vector<1x64xf32> to vector<8x64xf32>
    %106 = arith.addf %103, %105 : vector<8x64xf32>
    %cst_54 = arith.constant 0.000000e+00 : f32
    %107 = vector.broadcast %cst_54 : f32 to vector<8x64xf32>
    %108 = arith.maximumf %106, %107 : vector<8x64xf32>
    %c0_55 = arith.constant 0 : index
    %c0_56 = arith.constant 0 : index
    %109 = vector.load %arg13[%c0_55, %c0_56] : memref<64x32xf32, #tpu.memory_space<vmem>>, vector<64x32xf32>
    %cst_57 = arith.constant dense<0.000000e+00> : vector<8x32xf32>
    %110 = tpu.matmul %108, %109, %cst_57 {dimension_numbers = #tpu.dot_dimension_numbers<[1], [0], [0], [1], [0, 0, 1, 1], [], []>} : vector<8x64xf32>, vector<64x32xf32>, vector<8x32xf32> -> vector<8x32xf32>
    %c0_58 = arith.constant 0 : index
    %c0_59 = arith.constant 0 : index
    %111 = vector.load %arg14[%c0_58, %c0_59] : memref<1x32xf32, #tpu.memory_space<vmem>>, vector<1x32xf32>
    %112 = vector.broadcast %111 : vector<1x32xf32> to vector<8x32xf32>
    %113 = arith.addf %110, %112 : vector<8x32xf32>
    %114 = arith.addf %113, %101 : vector<8x32xf32>
    %cst_60 = arith.constant dense<0.000000e+00> : vector<8xf32>
    %115 = vector.multi_reduction <add>, %114, %cst_60 [1] : vector<8x32xf32> to vector<8xf32>
    %116 = vector.shape_cast %115 : vector<8xf32> to vector<8x1xf32>
    %cst_61 = arith.constant 3.200000e+01 : f32
    %117 = vector.broadcast %cst_61 : f32 to vector<8x1xf32>
    %118 = arith.divf %116, %117 : vector<8x1xf32>
    %119 = vector.broadcast %118 : vector<8x1xf32> to vector<8x32xf32>
    %120 = arith.subf %114, %119 : vector<8x32xf32>
    %121 = arith.mulf %120, %120 : vector<8x32xf32>
    %cst_62 = arith.constant dense<0.000000e+00> : vector<8xf32>
    %122 = vector.multi_reduction <add>, %121, %cst_62 [1] : vector<8x32xf32> to vector<8xf32>
    %123 = vector.shape_cast %122 : vector<8xf32> to vector<8x1xf32>
    %cst_63 = arith.constant 3.200000e+01 : f32
    %124 = vector.broadcast %cst_63 : f32 to vector<8x1xf32>
    %125 = arith.divf %123, %124 : vector<8x1xf32>
    %cst_64 = arith.constant 9.99999974E-6 : f32
    %126 = vector.broadcast %cst_64 : f32 to vector<8x1xf32>
    %127 = arith.addf %125, %126 : vector<8x1xf32>
    %128 = math.rsqrt %127 : vector<8x1xf32>
    %129 = vector.broadcast %128 : vector<8x1xf32> to vector<8x32xf32>
    %130 = arith.mulf %120, %129 : vector<8x32xf32>
    %131 = vector.broadcast %8 : vector<1x32xf32> to vector<8x32xf32>
    %132 = arith.mulf %130, %131 : vector<8x32xf32>
    %133 = vector.broadcast %9 : vector<1x32xf32> to vector<8x32xf32>
    %134 = arith.addf %132, %133 : vector<8x32xf32>
    %c0_65 = arith.constant 0 : index
    %c0_66 = arith.constant 0 : index
    %135 = vector.load %arg5[%c0_65, %c0_66] : memref<32x96xf32, #tpu.memory_space<vmem>>, vector<32x96xf32>
    %cst_67 = arith.constant dense<0.000000e+00> : vector<8x96xf32>
    %136 = tpu.matmul %134, %135, %cst_67 {dimension_numbers = #tpu.dot_dimension_numbers<[1], [0], [0], [1], [0, 0, 1, 1], [], []>} : vector<8x32xf32>, vector<32x96xf32>, vector<8x96xf32> -> vector<8x96xf32>
    %c0_68 = arith.constant 0 : index
    %c0_69 = arith.constant 0 : index
    %137 = vector.load %arg6[%c0_68, %c0_69] : memref<1x96xf32, #tpu.memory_space<vmem>>, vector<1x96xf32>
    %138 = vector.broadcast %137 : vector<1x96xf32> to vector<8x96xf32>
    %139 = arith.addf %136, %138 : vector<8x96xf32>
    %140 = vector.extract_strided_slice %139 {offsets = [0, 0], sizes = [8, 32], strides = [1, 1]} : vector<8x96xf32> to vector<8x32xf32>
    %141 = vector.extract_strided_slice %139 {offsets = [0, 32], sizes = [8, 32], strides = [1, 1]} : vector<8x96xf32> to vector<8x32xf32>
    %142 = vector.extract_strided_slice %139 {offsets = [0, 64], sizes = [8, 32], strides = [1, 1]} : vector<8x96xf32> to vector<8x32xf32>
    %cst_70 = arith.constant dense<0.000000e+00> : vector<8x8xf32>
    %143 = tpu.matmul %140, %141, %cst_70 {dimension_numbers = #tpu.dot_dimension_numbers<[1], [1], [0], [0], [0, 0, 1, 0], [], []>} : vector<8x32xf32>, vector<8x32xf32>, vector<8x8xf32> -> vector<8x8xf32>
    %cst_71 = arith.constant 0.176776692 : f32
    %144 = vector.broadcast %cst_71 : f32 to vector<8x8xf32>
    %145 = arith.mulf %143, %144 : vector<8x8xf32>
    %146 = arith.addf %145, %5 : vector<8x8xf32>
    %cst_72 = arith.constant dense<0xFF800000> : vector<8xf32>
    %147 = vector.multi_reduction <maximumf>, %146, %cst_72 [1] : vector<8x8xf32> to vector<8xf32>
    %148 = vector.shape_cast %147 : vector<8xf32> to vector<8x1xf32>
    %149 = vector.broadcast %148 : vector<8x1xf32> to vector<8x8xf32>
    %150 = arith.subf %146, %149 : vector<8x8xf32>
    %151 = math.exp %150 : vector<8x8xf32>
    %cst_73 = arith.constant dense<0.000000e+00> : vector<8xf32>
    %152 = vector.multi_reduction <add>, %151, %cst_73 [1] : vector<8x8xf32> to vector<8xf32>
    %153 = vector.shape_cast %152 : vector<8xf32> to vector<8x1xf32>
    %154 = tpu.reciprocal %153 {approx = true} : vector<8x1xf32> -> vector<8x1xf32>
    %155 = vector.broadcast %154 : vector<8x1xf32> to vector<8x8xf32>
    %156 = arith.mulf %151, %155 : vector<8x8xf32>
    %cst_74 = arith.constant dense<0.000000e+00> : vector<8x32xf32>
    %157 = tpu.matmul %156, %142, %cst_74 {dimension_numbers = #tpu.dot_dimension_numbers<[1], [0], [0], [1], [0, 0, 1, 1], [], []>} : vector<8x8xf32>, vector<8x32xf32>, vector<8x32xf32> -> vector<8x32xf32>
    %158 = arith.addf %157, %134 : vector<8x32xf32>
    %cst_75 = arith.constant dense<0.000000e+00> : vector<8xf32>
    %159 = vector.multi_reduction <add>, %158, %cst_75 [1] : vector<8x32xf32> to vector<8xf32>
    %160 = vector.shape_cast %159 : vector<8xf32> to vector<8x1xf32>
    %cst_76 = arith.constant 3.200000e+01 : f32
    %161 = vector.broadcast %cst_76 : f32 to vector<8x1xf32>
    %162 = arith.divf %160, %161 : vector<8x1xf32>
    %163 = vector.broadcast %162 : vector<8x1xf32> to vector<8x32xf32>
    %164 = arith.subf %158, %163 : vector<8x32xf32>
    %165 = arith.mulf %164, %164 : vector<8x32xf32>
    %cst_77 = arith.constant dense<0.000000e+00> : vector<8xf32>
    %166 = vector.multi_reduction <add>, %165, %cst_77 [1] : vector<8x32xf32> to vector<8xf32>
    %167 = vector.shape_cast %166 : vector<8xf32> to vector<8x1xf32>
    %cst_78 = arith.constant 3.200000e+01 : f32
    %168 = vector.broadcast %cst_78 : f32 to vector<8x1xf32>
    %169 = arith.divf %167, %168 : vector<8x1xf32>
    %cst_79 = arith.constant 9.99999974E-6 : f32
    %170 = vector.broadcast %cst_79 : f32 to vector<8x1xf32>
    %171 = arith.addf %169, %170 : vector<8x1xf32>
    %172 = math.rsqrt %171 : vector<8x1xf32>
    %173 = vector.broadcast %172 : vector<8x1xf32> to vector<8x32xf32>
    %174 = arith.mulf %164, %173 : vector<8x32xf32>
    %175 = vector.broadcast %8 : vector<1x32xf32> to vector<8x32xf32>
    %176 = arith.mulf %174, %175 : vector<8x32xf32>
    %177 = vector.broadcast %9 : vector<1x32xf32> to vector<8x32xf32>
    %178 = arith.addf %176, %177 : vector<8x32xf32>
    %c0_80 = arith.constant 0 : index
    %c0_81 = arith.constant 0 : index
    %179 = vector.load %arg7[%c0_80, %c0_81] : memref<32x32xf32, #tpu.memory_space<vmem>>, vector<32x32xf32>
    %cst_82 = arith.constant dense<0.000000e+00> : vector<8x32xf32>
    %180 = tpu.matmul %178, %179, %cst_82 {dimension_numbers = #tpu.dot_dimension_numbers<[1], [0], [0], [1], [0, 0, 1, 1], [], []>} : vector<8x32xf32>, vector<32x32xf32>, vector<8x32xf32> -> vector<8x32xf32>
    %c0_83 = arith.constant 0 : index
    %c0_84 = arith.constant 0 : index
    %181 = vector.load %arg8[%c0_83, %c0_84] : memref<1x32xf32, #tpu.memory_space<vmem>>, vector<1x32xf32>
    %182 = vector.broadcast %181 : vector<1x32xf32> to vector<8x32xf32>
    %183 = arith.addf %180, %182 : vector<8x32xf32>
    %cst_85 = arith.constant dense<0.000000e+00> : vector<8x8xf32>
    %184 = tpu.matmul %183, %15, %cst_85 {dimension_numbers = #tpu.dot_dimension_numbers<[1], [1], [0], [0], [0, 0, 1, 0], [], []>} : vector<8x32xf32>, vector<8x32xf32>, vector<8x8xf32> -> vector<8x8xf32>
    %cst_86 = arith.constant 0.176776692 : f32
    %185 = vector.broadcast %cst_86 : f32 to vector<8x8xf32>
    %186 = arith.mulf %184, %185 : vector<8x8xf32>
    %187 = arith.addf %186, %7 : vector<8x8xf32>
    %cst_87 = arith.constant dense<0xFF800000> : vector<8xf32>
    %188 = vector.multi_reduction <maximumf>, %187, %cst_87 [1] : vector<8x8xf32> to vector<8xf32>
    %189 = vector.shape_cast %188 : vector<8xf32> to vector<8x1xf32>
    %190 = vector.broadcast %189 : vector<8x1xf32> to vector<8x8xf32>
    %191 = arith.subf %187, %190 : vector<8x8xf32>
    %192 = math.exp %191 : vector<8x8xf32>
    %cst_88 = arith.constant dense<0.000000e+00> : vector<8xf32>
    %193 = vector.multi_reduction <add>, %192, %cst_88 [1] : vector<8x8xf32> to vector<8xf32>
    %194 = vector.shape_cast %193 : vector<8xf32> to vector<8x1xf32>
    %195 = tpu.reciprocal %194 {approx = true} : vector<8x1xf32> -> vector<8x1xf32>
    %196 = vector.broadcast %195 : vector<8x1xf32> to vector<8x8xf32>
    %197 = arith.mulf %192, %196 : vector<8x8xf32>
    %cst_89 = arith.constant dense<0.000000e+00> : vector<8x32xf32>
    %198 = tpu.matmul %197, %16, %cst_89 {dimension_numbers = #tpu.dot_dimension_numbers<[1], [0], [0], [1], [0, 0, 1, 1], [], []>} : vector<8x8xf32>, vector<8x32xf32>, vector<8x32xf32> -> vector<8x32xf32>
    %199 = arith.addf %198, %178 : vector<8x32xf32>
    %cst_90 = arith.constant dense<0.000000e+00> : vector<8xf32>
    %200 = vector.multi_reduction <add>, %199, %cst_90 [1] : vector<8x32xf32> to vector<8xf32>
    %201 = vector.shape_cast %200 : vector<8xf32> to vector<8x1xf32>
    %cst_91 = arith.constant 3.200000e+01 : f32
    %202 = vector.broadcast %cst_91 : f32 to vector<8x1xf32>
    %203 = arith.divf %201, %202 : vector<8x1xf32>
    %204 = vector.broadcast %203 : vector<8x1xf32> to vector<8x32xf32>
    %205 = arith.subf %199, %204 : vector<8x32xf32>
    %206 = arith.mulf %205, %205 : vector<8x32xf32>
    %cst_92 = arith.constant dense<0.000000e+00> : vector<8xf32>
    %207 = vector.multi_reduction <add>, %206, %cst_92 [1] : vector<8x32xf32> to vector<8xf32>
    %208 = vector.shape_cast %207 : vector<8xf32> to vector<8x1xf32>
    %cst_93 = arith.constant 3.200000e+01 : f32
    %209 = vector.broadcast %cst_93 : f32 to vector<8x1xf32>
    %210 = arith.divf %208, %209 : vector<8x1xf32>
    %cst_94 = arith.constant 9.99999974E-6 : f32
    %211 = vector.broadcast %cst_94 : f32 to vector<8x1xf32>
    %212 = arith.addf %210, %211 : vector<8x1xf32>
    %213 = math.rsqrt %212 : vector<8x1xf32>
    %214 = vector.broadcast %213 : vector<8x1xf32> to vector<8x32xf32>
    %215 = arith.mulf %205, %214 : vector<8x32xf32>
    %216 = vector.broadcast %8 : vector<1x32xf32> to vector<8x32xf32>
    %217 = arith.mulf %215, %216 : vector<8x32xf32>
    %218 = vector.broadcast %9 : vector<1x32xf32> to vector<8x32xf32>
    %219 = arith.addf %217, %218 : vector<8x32xf32>
    %c0_95 = arith.constant 0 : index
    %c0_96 = arith.constant 0 : index
    %220 = vector.load %arg11[%c0_95, %c0_96] : memref<32x64xf32, #tpu.memory_space<vmem>>, vector<32x64xf32>
    %cst_97 = arith.constant dense<0.000000e+00> : vector<8x64xf32>
    %221 = tpu.matmul %198, %220, %cst_97 {dimension_numbers = #tpu.dot_dimension_numbers<[1], [0], [0], [1], [0, 0, 1, 1], [], []>} : vector<8x32xf32>, vector<32x64xf32>, vector<8x64xf32> -> vector<8x64xf32>
    %c0_98 = arith.constant 0 : index
    %c0_99 = arith.constant 0 : index
    %222 = vector.load %arg12[%c0_98, %c0_99] : memref<1x64xf32, #tpu.memory_space<vmem>>, vector<1x64xf32>
    %223 = vector.broadcast %222 : vector<1x64xf32> to vector<8x64xf32>
    %224 = arith.addf %221, %223 : vector<8x64xf32>
    %cst_100 = arith.constant 0.000000e+00 : f32
    %225 = vector.broadcast %cst_100 : f32 to vector<8x64xf32>
    %226 = arith.maximumf %224, %225 : vector<8x64xf32>
    %c0_101 = arith.constant 0 : index
    %c0_102 = arith.constant 0 : index
    %227 = vector.load %arg13[%c0_101, %c0_102] : memref<64x32xf32, #tpu.memory_space<vmem>>, vector<64x32xf32>
    %cst_103 = arith.constant dense<0.000000e+00> : vector<8x32xf32>
    %228 = tpu.matmul %226, %227, %cst_103 {dimension_numbers = #tpu.dot_dimension_numbers<[1], [0], [0], [1], [0, 0, 1, 1], [], []>} : vector<8x64xf32>, vector<64x32xf32>, vector<8x32xf32> -> vector<8x32xf32>
    %c0_104 = arith.constant 0 : index
    %c0_105 = arith.constant 0 : index
    %229 = vector.load %arg14[%c0_104, %c0_105] : memref<1x32xf32, #tpu.memory_space<vmem>>, vector<1x32xf32>
    %230 = vector.broadcast %229 : vector<1x32xf32> to vector<8x32xf32>
    %231 = arith.addf %228, %230 : vector<8x32xf32>
    %232 = arith.addf %231, %219 : vector<8x32xf32>
    %cst_106 = arith.constant dense<0.000000e+00> : vector<8xf32>
    %233 = vector.multi_reduction <add>, %232, %cst_106 [1] : vector<8x32xf32> to vector<8xf32>
    %234 = vector.shape_cast %233 : vector<8xf32> to vector<8x1xf32>
    %cst_107 = arith.constant 3.200000e+01 : f32
    %235 = vector.broadcast %cst_107 : f32 to vector<8x1xf32>
    %236 = arith.divf %234, %235 : vector<8x1xf32>
    %237 = vector.broadcast %236 : vector<8x1xf32> to vector<8x32xf32>
    %238 = arith.subf %232, %237 : vector<8x32xf32>
    %239 = arith.mulf %238, %238 : vector<8x32xf32>
    %cst_108 = arith.constant dense<0.000000e+00> : vector<8xf32>
    %240 = vector.multi_reduction <add>, %239, %cst_108 [1] : vector<8x32xf32> to vector<8xf32>
    %241 = vector.shape_cast %240 : vector<8xf32> to vector<8x1xf32>
    %cst_109 = arith.constant 3.200000e+01 : f32
    %242 = vector.broadcast %cst_109 : f32 to vector<8x1xf32>
    %243 = arith.divf %241, %242 : vector<8x1xf32>
    %cst_110 = arith.constant 9.99999974E-6 : f32
    %244 = vector.broadcast %cst_110 : f32 to vector<8x1xf32>
    %245 = arith.addf %243, %244 : vector<8x1xf32>
    %246 = math.rsqrt %245 : vector<8x1xf32>
    %247 = vector.broadcast %246 : vector<8x1xf32> to vector<8x32xf32>
    %248 = arith.mulf %238, %247 : vector<8x32xf32>
    %249 = vector.broadcast %8 : vector<1x32xf32> to vector<8x32xf32>
    %250 = arith.mulf %248, %249 : vector<8x32xf32>
    %251 = vector.broadcast %9 : vector<1x32xf32> to vector<8x32xf32>
    %252 = arith.addf %250, %251 : vector<8x32xf32>
    %c0_111 = arith.constant 0 : index
    %c0_112 = arith.constant 0 : index
    %c0_113 = arith.constant 0 : index
    %253 = vector.load %arg17[%c0_111, %c0_112, %c0_113] : memref<1x8x32xf32, #tpu.memory_space<vmem>>, vector<1x8x32xf32>
    %254 = vector.shape_cast %253 : vector<1x8x32xf32> to vector<8x32xf32>
    %255 = vector.shape_cast %252 : vector<8x32xf32> to vector<1x8x32xf32>
    tpu.vector_store %arg17[%c0_111, %c0_112, %c0_113], %255 {strides = array<i32>} : memref<1x8x32xf32, #tpu.memory_space<vmem>>, vector<1x8x32xf32>,
    return
  }
  func.func @transform_0(%arg0: i32) -> (i32, i32, i32) {
    %c0_i32 = arith.constant 0 : i32
    %c0_i32_0 = arith.constant 0 : i32
    %c0_i32_1 = arith.constant 0 : i32
    return %arg0, %c0_i32, %c0_i32_0 : i32, i32, i32
  }
  func.func @transform_1(%arg0: i32) -> (i32, i32, i32) {
    %c0_i32 = arith.constant 0 : i32
    %c0_i32_0 = arith.constant 0 : i32
    %c0_i32_1 = arith.constant 0 : i32
    return %arg0, %c0_i32, %c0_i32_0 : i32, i32, i32
  }
  func.func @transform_2(%arg0: i32) -> (i32, i32, i32) {
    %c0_i32 = arith.constant 0 : i32
    %c0_i32_0 = arith.constant 0 : i32
    %c0_i32_1 = arith.constant 0 : i32
    return %arg0, %c0_i32, %c0_i32_0 : i32, i32, i32
  }
  func.func @transform_3(%arg0: i32) -> (i32, i32, i32) {
    %c0_i32 = arith.constant 0 : i32
    %c0_i32_0 = arith.constant 0 : i32
    %c0_i32_1 = arith.constant 0 : i32
    return %arg0, %c0_i32, %c0_i32_0 : i32, i32, i32
  }
  func.func @transform_4(%arg0: i32) -> (i32, i32) {
    %c0_i32 = arith.constant 0 : i32
    %c0_i32_0 = arith.constant 0 : i32
    %c0_i32_1 = arith.constant 0 : i32
    return %c0_i32, %c0_i32_0 : i32, i32
  }
  func.func @transform_5(%arg0: i32) -> (i32, i32) {
    %c0_i32 = arith.constant 0 : i32
    %c0_i32_0 = arith.constant 0 : i32
    %c0_i32_1 = arith.constant 0 : i32
    return %c0_i32, %c0_i32_0 : i32, i32
  }
  func.func @transform_6(%arg0: i32) -> (i32, i32) {
    %c0_i32 = arith.constant 0 : i32
    %c0_i32_0 = arith.constant 0 : i32
    %c0_i32_1 = arith.constant 0 : i32
    return %c0_i32, %c0_i32_0 : i32, i32
  }
  func.func @transform_7(%arg0: i32) -> (i32, i32) {
    %c0_i32 = arith.constant 0 : i32
    %c0_i32_0 = arith.constant 0 : i32
    %c0_i32_1 = arith.constant 0 : i32
    return %c0_i32, %c0_i32_0 : i32, i32
  }
  func.func @transform_8(%arg0: i32) -> (i32, i32) {
    %c0_i32 = arith.constant 0 : i32
    %c0_i32_0 = arith.constant 0 : i32
    %c0_i32_1 = arith.constant 0 : i32
    return %c0_i32, %c0_i32_0 : i32, i32
  }
  func.func @transform_9(%arg0: i32) -> (i32, i32) {
    %c0_i32 = arith.constant 0 : i32
    %c0_i32_0 = arith.constant 0 : i32
    %c0_i32_1 = arith.constant 0 : i32
    return %c0_i32, %c0_i32_0 : i32, i32
  }
  func.func @transform_10(%arg0: i32) -> (i32, i32) {
    %c0_i32 = arith.constant 0 : i32
    %c0_i32_0 = arith.constant 0 : i32
    %c0_i32_1 = arith.constant 0 : i32
    return %c0_i32, %c0_i32_0 : i32, i32
  }
  func.func @transform_11(%arg0: i32) -> (i32, i32) {
    %c0_i32 = arith.constant 0 : i32
    %c0_i32_0 = arith.constant 0 : i32
    %c0_i32_1 = arith.constant 0 : i32
    return %c0_i32, %c0_i32_0 : i32, i32
  }
  func.func @transform_12(%arg0: i32) -> (i32, i32) {
    %c0_i32 = arith.constant 0 : i32
    %c0_i32_0 = arith.constant 0 : i32
    %c0_i32_1 = arith.constant 0 : i32
    return %c0_i32, %c0_i32_0 : i32, i32
  }
  func.func @transform_13(%arg0: i32) -> (i32, i32) {
    %c0_i32 = arith.constant 0 : i32
    %c0_i32_0 = arith.constant 0 : i32
    %c0_i32_1 = arith.constant 0 : i32
    return %c0_i32, %c0_i32_0 : i32, i32
  }
  func.func @transform_14(%arg0: i32) -> (i32, i32) {
    %c0_i32 = arith.constant 0 : i32
    %c0_i32_0 = arith.constant 0 : i32
    %c0_i32_1 = arith.constant 0 : i32
    return %c0_i32, %c0_i32_0 : i32, i32
  }
  func.func @transform_15(%arg0: i32) -> (i32, i32) {
    %c0_i32 = arith.constant 0 : i32
    %c0_i32_0 = arith.constant 0 : i32
    %c0_i32_1 = arith.constant 0 : i32
    return %c0_i32, %c0_i32_0 : i32, i32
  }
  func.func @transform_16(%arg0: i32) -> (i32, i32, i32) {
    %c0_i32 = arith.constant 0 : i32
    %c0_i32_0 = arith.constant 0 : i32
    %c0_i32_1 = arith.constant 0 : i32
    return %arg0, %c0_i32, %c0_i32_0 : i32, i32, i32
  }
}

</mosaic_0001>

<llo_original>
// kernel: decoder_forward.1
$region0: #{decoder_forward.1}
  #allocation0 [shape = 'u32[]', space=smem, size = 0x4, offset = 0x4, fixed_abs, tag = 'smem constant byte address 0x4 - core index']
  #allocation1 [shape = 'u32[144,128]{1,0:T(1,128)}', space=vmem, size = 0x12000, scoped, tag = 'internal scratch']
  %s0 = inlined_call_operand.vmem [shape: f32[2,8,32], index: 0, kind: input, shape index: {}]
  %s1 = inlined_call_operand.vmem [shape: f32[2,8,32], index: 1, kind: input, shape index: {}]
  %s2 = inlined_call_operand.vmem [shape: f32[2,8,8], index: 2, kind: input, shape index: {}]
  %s3 = inlined_call_operand.vmem [shape: f32[2,8,8], index: 3, kind: input, shape index: {}]
  %s4 = inlined_call_operand.vmem [shape: f32[32,96], index: 4, kind: input, shape index: {}]
  %s5 = inlined_call_operand.vmem [shape: f32[1,96], index: 5, kind: input, shape index: {}]
  %s6 = inlined_call_operand.vmem [shape: f32[32,32], index: 6, kind: input, shape index: {}]
  %s7 = inlined_call_operand.vmem [shape: f32[1,32], index: 7, kind: input, shape index: {}]
  %s8 = inlined_call_operand.vmem [shape: f32[32,64], index: 8, kind: input, shape index: {}]
  %s9 = inlined_call_operand.vmem [shape: f32[1,64], index: 9, kind: input, shape index: {}]
  %s10 = inlined_call_operand.vmem [shape: f32[32,64], index: 10, kind: input, shape index: {}]
  %s11 = inlined_call_operand.vmem [shape: f32[1,64], index: 11, kind: input, shape index: {}]
  %s12 = inlined_call_operand.vmem [shape: f32[64,32], index: 12, kind: input, shape index: {}]
  %s13 = inlined_call_operand.vmem [shape: f32[1,32], index: 13, kind: input, shape index: {}]
  %s14 = inlined_call_operand.vmem [shape: f32[1,32], index: 14, kind: input, shape index: {}]
  %s15 = inlined_call_operand.vmem [shape: f32[1,32], index: 15, kind: input, shape index: {}]
  %s16 = inlined_call_operand.hbm [shape: f32[2,8,32], index: 16, kind: output, shape index: {}]
  %s17 = sld [smem:[#allocation0]]
  $region97: #{decoder_forward.1} parent=0
    _
  %s19 = ssub.s32 1, %s17
  %s20 = scalar_select 0, %s19, %s17
  $region1: #{decoder_forward.1} parent=0
    #allocation2 [shape = 'u8[8192]{0}', space=vmem, size = 0x2000, scoped, tag = 'output window, operand 0']
    #allocation3 [shape = 's32[2]{0}', space=sflag, size = 0x8, scoped, tag = 'scoped memory for decoder_forward.1']
    %21 = vsyncpa [#allocation3], 0
    %s22 = scalar_lea.sflag [#allocation3], 1
    %23 = vsyncpa %s22, 0
    loop: start=0, step=1, limit=4
    $region2: #{decoder_forward.1} parent=1 // loop_pre_header
      _
    $region3: #{decoder_forward.1} parent=1 // loop_header
      %s25 = sphi 0, %s29
      %p26 = scmp.ge.s32.totalorder %s25, 4
      %s35 = sphi 0, %s37
      %s38 = sphi 0, %s35
      %s39 = sphi 0, %s38
      %s55 = sphi 0, %s39
      %s61 = sphi 0, %s63
      %s64 = sphi 0, %s61
      %s65 = sphi 0, %s64
      %s81 = sphi 0, %s65
      %s87 = sphi 0, %s89
      %s90 = sphi 0, %s87
      %s91 = sphi 0, %s90
      %s107 = sphi 0, %s91
      %s113 = sphi 0, %s115
      %s116 = sphi 0, %s113
      %s117 = sphi 0, %s116
      %s133 = sphi 0, %s117
      %s137 = sphi 0, %s137
      %s139 = sphi 0, %s137
      %s140 = sphi 0, %s139
      %s154 = sphi 0, %s140
      %s158 = sphi 0, %s158
      %s160 = sphi 0, %s158
      %s161 = sphi 0, %s160
      %s175 = sphi 0, %s161
      %s179 = sphi 0, %s179
      %s181 = sphi 0, %s179
      %s182 = sphi 0, %s181
      %s196 = sphi 0, %s182
      %s200 = sphi 0, %s200
      %s202 = sphi 0, %s200
      %s203 = sphi 0, %s202
      %s217 = sphi 0, %s203
      %s221 = sphi 0, %s221
      %s223 = sphi 0, %s221
      %s224 = sphi 0, %s223
      %s238 = sphi 0, %s224
      %s242 = sphi 0, %s242
      %s244 = sphi 0, %s242
      %s245 = sphi 0, %s244
      %s259 = sphi 0, %s245
      %s263 = sphi 0, %s263
      %s265 = sphi 0, %s263
      %s266 = sphi 0, %s265
      %s280 = sphi 0, %s266
      %s284 = sphi 0, %s284
      %s286 = sphi 0, %s284
      %s287 = sphi 0, %s286
      %s301 = sphi 0, %s287
      %s305 = sphi 0, %s305
      %s307 = sphi 0, %s305
      %s308 = sphi 0, %s307
      %s322 = sphi 0, %s308
      %s326 = sphi 0, %s326
      %s328 = sphi 0, %s326
      %s329 = sphi 0, %s328
      %s343 = sphi 0, %s329
      %s347 = sphi 0, %s347
      %s349 = sphi 0, %s347
      %s350 = sphi 0, %s349
      %s364 = sphi 0, %s350
      %s368 = sphi 0, %s368
      %s370 = sphi 0, %s368
      %s371 = sphi 0, %s370
      %s385 = sphi 0, %s371
      %s391 = sphi 0, %s393
      %s394 = sphi 0, %s391
      %s395 = sphi 0, %s394
      %s411 = sphi 0, %s395
    $region4: #{decoder_forward.1} parent=1 // loop_header_branch
      %28 = sbr.rel (%p26) target = $region8
    $region5: #{decoder_forward.1} parent=1 // loop_body
      %s30 = ssub.s32 %s25, 1
      %s31 = ssub.s32 %s25, 2
      %s32 = sadd.s32 %s25, 1
      %s33 = ssub.s32 %s25, %s32
      %p34 = scmp.eq.s32.totalorder %s33, 0
      %s36 = sadd.s32 %s35, 1
      %s37 = scalar_select %p34, %s35, %s36
      %p40 = pneg %p34
      %p41 = scmp.eq.s32.totalorder %s25, 1
      %p42 = por %p40, %p41
      %p43 = scmp.ne.s32.totalorder %s35, %s38
      %p44 = scmp.eq.s32.totalorder %s25, 0
      %p45 = por %p43, %p44
      %p46 = scmp.ne.s32.totalorder %s35, %s38
      %p47 = scmp.eq.s32.totalorder %s30, 1
      %p48 = por %p46, %p47
      %p49 = scmp.ne.s32.totalorder %s38, %s39
      %p50 = scmp.eq.s32.totalorder %s30, 0
      %p51 = por %p49, %p50
      %p52 = scmp.ne.s32.totalorder %s38, %s39
      %p53 = scmp.eq.s32.totalorder %s31, 1
      %p54 = por %p52, %p53
      %p56 = scmp.ne.s32.totalorder %s39, %s55
      %p57 = scmp.eq.s32.totalorder %s31, 0
      %p58 = por %p56, %p57
      %s59 = ssub.s32 %s25, %s32
      %p60 = scmp.eq.s32.totalorder %s59, 0
      %s62 = sadd.s32 %s61, 1
      %s63 = scalar_select %p60, %s61, %s62
      %p66 = pneg %p60
      %p67 = scmp.eq.s32.totalorder %s25, 1
      %p68 = por %p66, %p67
      %p69 = scmp.ne.s32.totalorder %s61, %s64
      %p70 = scmp.eq.s32.totalorder %s25, 0
      %p71 = por %p69, %p70
      %p72 = scmp.ne.s32.totalorder %s61, %s64
      %p73 = scmp.eq.s32.totalorder %s30, 1
      %p74 = por %p72, %p73
      %p75 = scmp.ne.s32.totalorder %s64, %s65
      %p76 = scmp.eq.s32.totalorder %s30, 0
      %p77 = por %p75, %p76
      %p78 = scmp.ne.s32.totalorder %s64, %s65
      %p79 = scmp.eq.s32.totalorder %s31, 1
      %p80 = por %p78, %p79
      %p82 = scmp.ne.s32.totalorder %s65, %s81
      %p83 = scmp.eq.s32.totalorder %s31, 0
      %p84 = por %p82, %p83
      %s85 = ssub.s32 %s25, %s32
      %p86 = scmp.eq.s32.totalorder %s85, 0
      %s88 = sadd.s32 %s87, 1
      %s89 = scalar_select %p86, %s87, %s88
      %p92 = pneg %p86
      %p93 = scmp.eq.s32.totalorder %s25, 1
      %p94 = por %p92, %p93
      %p95 = scmp.ne.s32.totalorder %s87, %s90
      %p96 = scmp.eq.s32.totalorder %s25, 0
      %p97 = por %p95, %p96
      %p98 = scmp.ne.s32.totalorder %s87, %s90
      %p99 = scmp.eq.s32.totalorder %s30, 1
      %p100 = por %p98, %p99
      %p101 = scmp.ne.s32.totalorder %s90, %s91
      %p102 = scmp.eq.s32.totalorder %s30, 0
      %p103 = por %p101, %p102
      %p104 = scmp.ne.s32.totalorder %s90, %s91
      %p105 = scmp.eq.s32.totalorder %s31, 1
      %p106 = por %p104, %p105
      %p108 = scmp.ne.s32.totalorder %s91, %s107
      %p109 = scmp.eq.s32.totalorder %s31, 0
      %p110 = por %p108, %p109
      %s111 = ssub.s32 %s25, %s32
      %p112 = scmp.eq.s32.totalorder %s111, 0
      %s114 = sadd.s32 %s113, 1
      %s115 = scalar_select %p112, %s113, %s114
      %p118 = pneg %p112
      %p119 = scmp.eq.s32.totalorder %s25, 1
      %p120 = por %p118, %p119
      %p121 = scmp.ne.s32.totalorder %s113, %s116
      %p122 = scmp.eq.s32.totalorder %s25, 0
      %p123 = por %p121, %p122
      %p124 = scmp.ne.s32.totalorder %s113, %s116
      %p125 = scmp.eq.s32.totalorder %s30, 1
      %p126 = por %p124, %p125
      %p127 = scmp.ne.s32.totalorder %s116, %s117
      %p128 = scmp.eq.s32.totalorder %s30, 0
      %p129 = por %p127, %p128
      %p130 = scmp.ne.s32.totalorder %s116, %s117
      %p131 = scmp.eq.s32.totalorder %s31, 1
      %p132 = por %p130, %p131
      %p134 = scmp.ne.s32.totalorder %s117, %s133
      %p135 = scmp.eq.s32.totalorder %s31, 0
      %p136 = por %p134, %p135
      %s138 = sadd.s32 %s137, 1
      %p141 = scmp.eq.s32.totalorder %s25, 1
      %p142 = scmp.ne.s32.totalorder %s137, %s139
      %p143 = scmp.eq.s32.totalorder %s25, 0
      %p144 = por %p142, %p143
      %p145 = scmp.ne.s32.totalorder %s137, %s139
      %p146 = scmp.eq.s32.totalorder %s30, 1
      %p147 = por %p145, %p146
      %p148 = scmp.ne.s32.totalorder %s139, %s140
      %p149 = scmp.eq.s32.totalorder %s30, 0
      %p150 = por %p148, %p149
      %p151 = scmp.ne.s32.totalorder %s139, %s140
      %p152 = scmp.eq.s32.totalorder %s31, 1
      %p153 = por %p151, %p152
      %p155 = scmp.ne.s32.totalorder %s140, %s154
      %p156 = scmp.eq.s32.totalorder %s31, 0
      %p157 = por %p155, %p156
      %s159 = sadd.s32 %s158, 1
      %p162 = scmp.eq.s32.totalorder %s25, 1
      %p163 = scmp.ne.s32.totalorder %s158, %s160
      %p164 = scmp.eq.s32.totalorder %s25, 0
      %p165 = por %p163, %p164
      %p166 = scmp.ne.s32.totalorder %s158, %s160
      %p167 = scmp.eq.s32.totalorder %s30, 1
      %p168 = por %p166, %p167
      %p169 = scmp.ne.s32.totalorder %s160, %s161
      %p170 = scmp.eq.s32.totalorder %s30, 0
      %p171 = por %p169, %p170
      %p172 = scmp.ne.s32.totalorder %s160, %s161
      %p173 = scmp.eq.s32.totalorder %s31, 1
      %p174 = por %p172, %p173
      %p176 = scmp.ne.s32.totalorder %s161, %s175
      %p177 = scmp.eq.s32.totalorder %s31, 0
      %p178 = por %p176, %p177
      %s180 = sadd.s32 %s179, 1
      %p183 = scmp.eq.s32.totalorder %s25, 1
      %p184 = scmp.ne.s32.totalorder %s179, %s181
      %p185 = scmp.eq.s32.totalorder %s25, 0
      %p186 = por %p184, %p185
      %p187 = scmp.ne.s32.totalorder %s179, %s181
      %p188 = scmp.eq.s32.totalorder %s30, 1
      %p189 = por %p187, %p188
      %p190 = scmp.ne.s32.totalorder %s181, %s182
      %p191 = scmp.eq.s32.totalorder %s30, 0
      %p192 = por %p190, %p191
      %p193 = scmp.ne.s32.totalorder %s181, %s182
      %p194 = scmp.eq.s32.totalorder %s31, 1
      %p195 = por %p193, %p194
      %p197 = scmp.ne.s32.totalorder %s182, %s196
      %p198 = scmp.eq.s32.totalorder %s31, 0
      %p199 = por %p197, %p198
      %s201 = sadd.s32 %s200, 1
      %p204 = scmp.eq.s32.totalorder %s25, 1
      %p205 = scmp.ne.s32.totalorder %s200, %s202
      %p206 = scmp.eq.s32.totalorder %s25, 0
      %p207 = por %p205, %p206
      %p208 = scmp.ne.s32.totalorder %s200, %s202
      %p209 = scmp.eq.s32.totalorder %s30, 1
      %p210 = por %p208, %p209
      %p211 = scmp.ne.s32.totalorder %s202, %s203
      %p212 = scmp.eq.s32.totalorder %s30, 0
      %p213 = por %p211, %p212
      %p214 = scmp.ne.s32.totalorder %s202, %s203
      %p215 = scmp.eq.s32.totalorder %s31, 1
      %p216 = por %p214, %p215
      %p218 = scmp.ne.s32.totalorder %s203, %s217
      %p219 = scmp.eq.s32.totalorder %s31, 0
      %p220 = por %p218, %p219
      %s222 = sadd.s32 %s221, 1
      %p225 = scmp.eq.s32.totalorder %s25, 1
      %p226 = scmp.ne.s32.totalorder %s221, %s223
      %p227 = scmp.eq.s32.totalorder %s25, 0
      %p228 = por %p226, %p227
      %p229 = scmp.ne.s32.totalorder %s221, %s223
      %p230 = scmp.eq.s32.totalorder %s30, 1
      %p231 = por %p229, %p230
      %p232 = scmp.ne.s32.totalorder %s223, %s224
      %p233 = scmp.eq.s32.totalorder %s30, 0
      %p234 = por %p232, %p233
      %p235 = scmp.ne.s32.totalorder %s223, %s224
      %p236 = scmp.eq.s32.totalorder %s31, 1
      %p237 = por %p235, %p236
      %p239 = scmp.ne.s32.totalorder %s224, %s238
      %p240 = scmp.eq.s32.totalorder %s31, 0
      %p241 = por %p239, %p240
      %s243 = sadd.s32 %s242, 1
      %p246 = scmp.eq.s32.totalorder %s25, 1
      %p247 = scmp.ne.s32.totalorder %s242, %s244
      %p248 = scmp.eq.s32.totalorder %s25, 0
      %p249 = por %p247, %p248
      %p250 = scmp.ne.s32.totalorder %s242, %s244
      %p251 = scmp.eq.s32.totalorder %s30, 1
      %p252 = por %p250, %p251
      %p253 = scmp.ne.s32.totalorder %s244, %s245
      %p254 = scmp.eq.s32.totalorder %s30, 0
      %p255 = por %p253, %p254
      %p256 = scmp.ne.s32.totalorder %s244, %s245
      %p257 = scmp.eq.s32.totalorder %s31, 1
      %p258 = por %p256, %p257
      %p260 = scmp.ne.s32.totalorder %s245, %s259
      %p261 = scmp.eq.s32.totalorder %s31, 0
      %p262 = por %p260, %p261
      %s264 = sadd.s32 %s263, 1
      %p267 = scmp.eq.s32.totalorder %s25, 1
      %p268 = scmp.ne.s32.totalorder %s263, %s265
      %p269 = scmp.eq.s32.totalorder %s25, 0
      %p270 = por %p268, %p269
      %p271 = scmp.ne.s32.totalorder %s263, %s265
      %p272 = scmp.eq.s32.totalorder %s30, 1
      %p273 = por %p271, %p272
      %p274 = scmp.ne.s32.totalorder %s265, %s266
      %p275 = scmp.eq.s32.totalorder %s30, 0
      %p276 = por %p274, %p275
      %p277 = scmp.ne.s32.totalorder %s265, %s266
      %p278 = scmp.eq.s32.totalorder %s31, 1
      %p279 = por %p277, %p278
      %p281 = scmp.ne.s32.totalorder %s266, %s280
      %p282 = scmp.eq.s32.totalorder %s31, 0
      %p283 = por %p281, %p282
      %s285 = sadd.s32 %s284, 1
      %p288 = scmp.eq.s32.totalorder %s25, 1
      %p289 = scmp.ne.s32.totalorder %s284, %s286
      %p290 = scmp.eq.s32.totalorder %s25, 0
      %p291 = por %p289, %p290
      %p292 = scmp.ne.s32.totalorder %s284, %s286
      %p293 = scmp.eq.s32.totalorder %s30, 1
      %p294 = por %p292, %p293
      %p295 = scmp.ne.s32.totalorder %s286, %s287
      %p296 = scmp.eq.s32.totalorder %s30, 0
      %p297 = por %p295, %p296
      %p298 = scmp.ne.s32.totalorder %s286, %s287
      %p299 = scmp.eq.s32.totalorder %s31, 1
      %p300 = por %p298, %p299
      %p302 = scmp.ne.s32.totalorder %s287, %s301
      %p303 = scmp.eq.s32.totalorder %s31, 0
      %p304 = por %p302, %p303
      %s306 = sadd.s32 %s305, 1
      %p309 = scmp.eq.s32.totalorder %s25, 1
      %p310 = scmp.ne.s32.totalorder %s305, %s307
      %p311 = scmp.eq.s32.totalorder %s25, 0
      %p312 = por %p310, %p311
      %p313 = scmp.ne.s32.totalorder %s305, %s307
      %p314 = scmp.eq.s32.totalorder %s30, 1
      %p315 = por %p313, %p314
      %p316 = scmp.ne.s32.totalorder %s307, %s308
      %p317 = scmp.eq.s32.totalorder %s30, 0
      %p318 = por %p316, %p317
      %p319 = scmp.ne.s32.totalorder %s307, %s308
      %p320 = scmp.eq.s32.totalorder %s31, 1
      %p321 = por %p319, %p320
      %p323 = scmp.ne.s32.totalorder %s308, %s322
      %p324 = scmp.eq.s32.totalorder %s31, 0
      %p325 = por %p323, %p324
      %s327 = sadd.s32 %s326, 1
      %p330 = scmp.eq.s32.totalorder %s25, 1
      %p331 = scmp.ne.s32.totalorder %s326, %s328
      %p332 = scmp.eq.s32.totalorder %s25, 0
      %p333 = por %p331, %p332
      %p334 = scmp.ne.s32.totalorder %s326, %s328
      %p335 = scmp.eq.s32.totalorder %s30, 1
      %p336 = por %p334, %p335
      %p337 = scmp.ne.s32.totalorder %s328, %s329
      %p338 = scmp.eq.s32.totalorder %s30, 0
      %p339 = por %p337, %p338
      %p340 = scmp.ne.s32.totalorder %s328, %s329
      %p341 = scmp.eq.s32.totalorder %s31, 1
      %p342 = por %p340, %p341
      %p344 = scmp.ne.s32.totalorder %s329, %s343
      %p345 = scmp.eq.s32.totalorder %s31, 0
      %p346 = por %p344, %p345
      %s348 = sadd.s32 %s347, 1
      %p351 = scmp.eq.s32.totalorder %s25, 1
      %p352 = scmp.ne.s32.totalorder %s347, %s349
      %p353 = scmp.eq.s32.totalorder %s25, 0
      %p354 = por %p352, %p353
      %p355 = scmp.ne.s32.totalorder %s347, %s349
      %p356 = scmp.eq.s32.totalorder %s30, 1
      %p357 = por %p355, %p356
      %p358 = scmp.ne.s32.totalorder %s349, %s350
      %p359 = scmp.eq.s32.totalorder %s30, 0
      %p360 = por %p358, %p359
      %p361 = scmp.ne.s32.totalorder %s349, %s350
      %p362 = scmp.eq.s32.totalorder %s31, 1
      %p363 = por %p361, %p362
      %p365 = scmp.ne.s32.totalorder %s350, %s364
      %p366 = scmp.eq.s32.totalorder %s31, 0
      %p367 = por %p365, %p366
      %s369 = sadd.s32 %s368, 1
      %p372 = scmp.eq.s32.totalorder %s25, 1
      %p373 = scmp.ne.s32.totalorder %s368, %s370
      %p374 = scmp.eq.s32.totalorder %s25, 0
      %p375 = por %p373, %p374
      %p376 = scmp.ne.s32.totalorder %s368, %s370
      %p377 = scmp.eq.s32.totalorder %s30, 1
      %p378 = por %p376, %p377
      %p379 = scmp.ne.s32.totalorder %s370, %s371
      %p380 = scmp.eq.s32.totalorder %s30, 0
      %p381 = por %p379, %p380
      %p382 = scmp.ne.s32.totalorder %s370, %s371
      %p383 = scmp.eq.s32.totalorder %s31, 1
      %p384 = por %p382, %p383
      %p386 = scmp.ne.s32.totalorder %s371, %s385
      %p387 = scmp.eq.s32.totalorder %s31, 0
      %p388 = por %p386, %p387
      %s389 = ssub.s32 %s25, %s32
      %p390 = scmp.eq.s32.totalorder %s389, 0
      %s392 = sadd.s32 %s391, 1
      %s393 = scalar_select %p390, %s391, %s392
      %p396 = pneg %p390
      %p397 = scmp.eq.s32.totalorder %s25, 1
      %p398 = por %p396, %p397
      %p399 = scmp.ne.s32.totalorder %s391, %s394
      %p400 = scmp.eq.s32.totalorder %s25, 0
      %p401 = por %p399, %p400
      %p402 = scmp.ne.s32.totalorder %s391, %s394
      %p403 = scmp.eq.s32.totalorder %s30, 1
      %p404 = por %p402, %p403
      %p405 = scmp.ne.s32.totalorder %s394, %s395
      %p406 = scmp.eq.s32.totalorder %s30, 0
      %p407 = por %p405, %p406
      %p408 = scmp.ne.s32.totalorder %s394, %s395
      %p409 = scmp.eq.s32.totalorder %s31, 1
      %p410 = por %p408, %p409
      %p412 = scmp.ne.s32.totalorder %s395, %s411
      %p413 = scmp.eq.s32.totalorder %s31, 0
      %p414 = por %p412, %p413
      %p415 = scmp.le.s32.totalorder 1, %s25
      %p416 = scmp.lt.s32.totalorder %s25, 3
      %p417 = pnand %p415, %p416
      %p418 = pneg %p417
      // Predicated region
      $region9: #{decoder_forward.1} parent=5 // pred_check
        _
      $region10: #{decoder_forward.1} parent=5 // pred_check_branch
        %420 = sbr.rel (%p417) target = $region12
      $region11: #{decoder_forward.1} parent=5 // pred_region
        %s421 = ssub.s32 %s25, 1
        // Predicated region
        $region13: #{decoder_forward.1} parent=11 // pred_check
          %p422 = pneg %p150
        $region14: #{decoder_forward.1} parent=11 // pred_check_branch
          %424 = sbr.rel (%p422) target = $region16
        $region15: #{decoder_forward.1} parent=11 // pred_region
          _
        $region16: #{decoder_forward.1} parent=11 // pred_fallthru
          _
        // Predicated region
        $region17: #{decoder_forward.1} parent=11 // pred_check
          %p425 = pneg %p171
        $region18: #{decoder_forward.1} parent=11 // pred_check_branch
          %427 = sbr.rel (%p425) target = $region20
        $region19: #{decoder_forward.1} parent=11 // pred_region
          _
        $region20: #{decoder_forward.1} parent=11 // pred_fallthru
          _
        // Predicated region
        $region21: #{decoder_forward.1} parent=11 // pred_check
          %p428 = pneg %p192
        $region22: #{decoder_forward.1} parent=11 // pred_check_branch
          %430 = sbr.rel (%p428) target = $region24
        $region23: #{decoder_forward.1} parent=11 // pred_region
          _
        $region24: #{decoder_forward.1} parent=11 // pred_fallthru
          _
        // Predicated region
        $region25: #{decoder_forward.1} parent=11 // pred_check
          %p431 = pneg %p213
        $region26: #{decoder_forward.1} parent=11 // pred_check_branch
          %433 = sbr.rel (%p431) target = $region28
        $region27: #{decoder_forward.1} parent=11 // pred_region
          _
        $region28: #{decoder_forward.1} parent=11 // pred_fallthru
          _
        // Predicated region
        $region29: #{decoder_forward.1} parent=11 // pred_check
          %p434 = pneg %p234
        $region30: #{decoder_forward.1} parent=11 // pred_check_branch
          %436 = sbr.rel (%p434) target = $region32
        $region31: #{decoder_forward.1} parent=11 // pred_region
          _
        $region32: #{decoder_forward.1} parent=11 // pred_fallthru
          _
        // Predicated region
        $region33: #{decoder_forward.1} parent=11 // pred_check
          %p437 = pneg %p255
        $region34: #{decoder_forward.1} parent=11 // pred_check_branch
          %439 = sbr.rel (%p437) target = $region36
        $region35: #{decoder_forward.1} parent=11 // pred_region
          _
        $region36: #{decoder_forward.1} parent=11 // pred_fallthru
          _
        // Predicated region
        $region37: #{decoder_forward.1} parent=11 // pred_check
          %p440 = pneg %p276
        $region38: #{decoder_forward.1} parent=11 // pred_check_branch
          %442 = sbr.rel (%p440) target = $region40
        $region39: #{decoder_forward.1} parent=11 // pred_region
          _
        $region40: #{decoder_forward.1} parent=11 // pred_fallthru
          _
        // Predicated region
        $region41: #{decoder_forward.1} parent=11 // pred_check
          %p443 = pneg %p297
        $region42: #{decoder_forward.1} parent=11 // pred_check_branch
          %445 = sbr.rel (%p443) target = $region44
        $region43: #{decoder_forward.1} parent=11 // pred_region
          _
        $region44: #{decoder_forward.1} parent=11 // pred_fallthru
          _
        // Predicated region
        $region45: #{decoder_forward.1} parent=11 // pred_check
          %p446 = pneg %p318
        $region46: #{decoder_forward.1} parent=11 // pred_check_branch
          %448 = sbr.rel (%p446) target = $region48
        $region47: #{decoder_forward.1} parent=11 // pred_region
          _
        $region48: #{decoder_forward.1} parent=11 // pred_fallthru
          _
        // Predicated region
        $region49: #{decoder_forward.1} parent=11 // pred_check
          %p449 = pneg %p339
        $region50: #{decoder_forward.1} parent=11 // pred_check_branch
          %451 = sbr.rel (%p449) target = $region52
        $region51: #{decoder_forward.1} parent=11 // pred_region
          _
        $region52: #{decoder_forward.1} parent=11 // pred_fallthru
          _
        // Predicated region
        $region53: #{decoder_forward.1} parent=11 // pred_check
          %p452 = pneg %p360
        $region54: #{decoder_forward.1} parent=11 // pred_check_branch
          %454 = sbr.rel (%p452) target = $region56
        $region55: #{decoder_forward.1} parent=11 // pred_region
          _
        $region56: #{decoder_forward.1} parent=11 // pred_fallthru
          _
        // Predicated region
        $region57: #{decoder_forward.1} parent=11 // pred_check
          %p455 = pneg %p381
        $region58: #{decoder_forward.1} parent=11 // pred_check_branch
          %457 = sbr.rel (%p455) target = $region60
        $region59: #{decoder_forward.1} parent=11 // pred_region
          _
        $region60: #{decoder_forward.1} parent=11 // pred_fallthru
          _
      $region12: #{decoder_forward.1} parent=5 // pred_fallthru
        _
      %p458 = scmp.lt.s32.totalorder %s25, 2
      // Predicated region
      $region61: #{decoder_forward.1} parent=5 // pred_check
        %p459 = pneg %p458
      $region62: #{decoder_forward.1} parent=5 // pred_check_branch
        %461 = sbr.rel (%p459) target = $region64
      $region63: #{decoder_forward.1} parent=5 // pred_region
        // Predicated region
        $region65: #{decoder_forward.1} parent=63 // pred_check
          %p462 = pneg %p45
        $region66: #{decoder_forward.1} parent=63 // pred_check_branch
          %464 = sbr.rel (%p462) target = $region68
        $region67: #{decoder_forward.1} parent=63 // pred_region
          %p465 = scmp.lt.s32.totalorder %s25, 1
          %s466 = scalar_select %p465, %s25, 1
          %s467 = smul.addr %s466, 8
          %s468 = scalar_lea.vmem %s0, %s467
        $region68: #{decoder_forward.1} parent=63 // pred_fallthru
          _
        // Predicated region
        $region69: #{decoder_forward.1} parent=63 // pred_check
          %p469 = pneg %p71
        $region70: #{decoder_forward.1} parent=63 // pred_check_branch
          %471 = sbr.rel (%p469) target = $region72
        $region71: #{decoder_forward.1} parent=63 // pred_region
          %p472 = scmp.lt.s32.totalorder %s25, 1
          %s473 = scalar_select %p472, %s25, 1
          %s474 = smul.addr %s473, 8
          %s475 = scalar_lea.vmem %s1, %s474
        $region72: #{decoder_forward.1} parent=63 // pred_fallthru
          _
        // Predicated region
        $region73: #{decoder_forward.1} parent=63 // pred_check
          %p476 = pneg %p97
        $region74: #{decoder_forward.1} parent=63 // pred_check_branch
          %478 = sbr.rel (%p476) target = $region76
        $region75: #{decoder_forward.1} parent=63 // pred_region
          %p479 = scmp.lt.s32.totalorder %s25, 1
          %s480 = scalar_select %p479, %s25, 1
          %s481 = smul.addr %s480, 8
          %s482 = scalar_lea.vmem %s2, %s481
        $region76: #{decoder_forward.1} parent=63 // pred_fallthru
          _
        // Predicated region
        $region77: #{decoder_forward.1} parent=63 // pred_check
          %p483 = pneg %p123
        $region78: #{decoder_forward.1} parent=63 // pred_check_branch
          %485 = sbr.rel (%p483) target = $region80
        $region79: #{decoder_forward.1} parent=63 // pred_region
          %p486 = scmp.lt.s32.totalorder %s25, 1
          %s487 = scalar_select %p486, %s25, 1
          %s488 = smul.addr %s487, 8
          %s489 = scalar_lea.vmem %s3, %s488
        $region80: #{decoder_forward.1} parent=63 // pred_fallthru
          _
      $region64: #{decoder_forward.1} parent=5 // pred_fallthru
        _
      %p490 = scmp.le.s32.totalorder 1, %s25
      %p491 = scmp.lt.s32.totalorder %s25, 3
      %p492 = pnand %p490, %p491
      %p493 = pneg %p492
      // Predicated region
      $region81: #{decoder_forward.1} parent=5 // pred_check
        _
      $region82: #{decoder_forward.1} parent=5 // pred_check_branch
        %495 = sbr.rel (%p492) target = $region84
      $region83: #{decoder_forward.1} parent=5 // pred_region
        %s496 = ssub.s32 %s25, 1
        %p497 = scmp.lt.s32.totalorder %s30, 1
        %s498 = scalar_select %p497, %s30, 1
        %s499 = smul.addr %s498, 8
        %s500 = scalar_lea.vmem %s0, %s499
        %p501 = pneg %p51
        %p502 = pneg %p48
        %p503 = scmp.lt.s32.totalorder %s30, 1
        %s504 = scalar_select %p503, %s30, 1
        %s505 = smul.addr %s504, 8
        %s506 = scalar_lea.vmem %s1, %s505
        %p507 = pneg %p77
        %p508 = pneg %p74
        %p509 = scmp.lt.s32.totalorder %s30, 1
        %s510 = scalar_select %p509, %s30, 1
        %s511 = smul.addr %s510, 8
        %s512 = scalar_lea.vmem %s2, %s511
        %p513 = pneg %p103
        %p514 = pneg %p100
        %p515 = scmp.lt.s32.totalorder %s30, 1
        %s516 = scalar_select %p515, %s30, 1
        %s517 = smul.addr %s516, 8
        %s518 = scalar_lea.vmem %s3, %s517
        %p519 = pneg %p129
        %p520 = pneg %p126
        %p521 = pneg %p150
        %p522 = pneg %p147
        %p523 = pneg %p171
        %p524 = pneg %p168
        %p525 = pneg %p192
        %p526 = pneg %p189
        %p527 = pneg %p213
        %p528 = pneg %p210
        %p529 = pneg %p234
        %p530 = pneg %p231
        %p531 = pneg %p255
        %p532 = pneg %p252
        %p533 = pneg %p276
        %p534 = pneg %p273
        %p535 = pneg %p297
        %p536 = pneg %p294
        %p537 = pneg %p318
        %p538 = pneg %p315
        %p539 = pneg %p339
        %p540 = pneg %p336
        %p541 = pneg %p360
        %p542 = pneg %p357
        %p543 = pneg %p381
        %p544 = pneg %p378
        %p545 = pneg %p407
        %p546 = pneg %p404
        %s547 = sand.u32 %s394, 1
        %s548 = scalar_lea.sflag [#allocation3], %s547
        %s549 = sand.u32 %s394, 1
        %s550 = smul.addr %s549, 8
        %s551 = scalar_lea.vmem [#allocation2], %s550
        %p552 = scmp.lt.s32.totalorder %s30, 1
        %s553 = scalar_select %p552, %s30, 1
        %s554 = smul.addr %s553, 8
        %s555 = scalar_lea.vmem %s0, %s554
        %p556 = scmp.lt.s32.totalorder %s30, 1
        %s557 = scalar_select %p556, %s30, 1
        %s558 = smul.addr %s557, 8
        %s559 = scalar_lea.vmem %s1, %s558
        %p560 = scmp.lt.s32.totalorder %s30, 1
        %s561 = scalar_select %p560, %s30, 1
        %s562 = smul.addr %s561, 8
        %s563 = scalar_lea.vmem %s2, %s562
        %p564 = scmp.lt.s32.totalorder %s30, 1
        %s565 = scalar_select %p564, %s30, 1
        %s566 = smul.addr %s565, 8
        %s567 = scalar_lea.vmem %s3, %s566
        %v568 = vld [vmem:[%s555] sm:$0xff]
        %v569 = vld [vmem:[%s559] sm:$0xff]
        %v570 = vld [vmem:[%s563] sm:$0xff]
        %v571 = vld [vmem:[%s567] sm:$0xff]
        %v572 = vld [vmem:[%s14] sm:$0x1]
        %v573 = vld [vmem:[%s15] sm:$0x1]
        %v574 = vld [vmem:[%s8] sm:$0xff]
        %v575 = vld [vmem:[%s8 + $0x8] sm:$0xff]
        %v576 = vld [vmem:[%s8 + $0x10] sm:$0xff]
        %v577 = vld [vmem:[%s8 + $0x18] sm:$0xff]
        %v578 = vld [vmem:[%s9] sm:$0x1]
        %v580 = vlaneseq
        %v581 = vshrl.u32 %v580, 7
        %v582 = vsub.s32 0, %v581
        %v583 = vrot.slane %v578, %v582
        %vm585 = vcmask 261120
        %v587 = vsel %vm585, %v569, 0
        %589 = vmatprep.subr.mxu0 0.0
        %590 = vmatpush1.msra.mxu0 0.0
        %591 = vmatprep.subr.mxu0 0.0
        %592 = vmatpush1.msra.mxu0 0.0
        %593 = vmatprep.subr.mxu0 0.0
        %594 = vmatpush1.msra.mxu0 0.0
        %595 = vmatprep.subr.mxu0 0.0
        %596 = vmatpush1.msra.mxu0 0.0
        %597 = vmatprep.subr.mxu0 0.0
        %598 = vmatpush1.msra.mxu0 0.0
        %599 = vmatprep.subr.mxu0 0.0
        %600 = vmatpush1.msra.mxu0 0.0
        %601 = vmatprep.subr.mxu0 0.0
        %602 = vmatpush1.msra.mxu0 0.0
        %603 = vmatprep.subr.mxu0 0.0
        %604 = vmatpush1.msra.mxu0 0.0
        %605 = vmatprep.subr.mxu0 0.0
        %606 = vmatpush1.msra.mxu0 0.0
        %607 = vmatprep.subr.mxu0 0.0
        %608 = vmatpush1.msra.mxu0 0.0
        %609 = vmatprep.subr.mxu0 0.0
        %610 = vmatpush1.msra.mxu0 0.0
        %611 = vmatprep.subr.mxu0 0.0
        %612 = vmatpush1.msra.mxu0 0.0
        %613 = vmatprep.subr.mxu0 0.0
        %614 = vmatpush1.msra.mxu0 %v577
        %615 = vmatprep.subr.mxu0 0.0
        %616 = vmatpush1.msra.mxu0 %v576
        %617 = vmatprep.subr.mxu0 0.0
        %618 = vmatpush1.msra.mxu0 %v575
        %619 = vmatprep.subr.mxu0 0.0
        %620 = vmatpush1.msra.mxu0 %v574
        %621 = vmatprep.subr.mxu0 0.0
        %622 = vmatpush2.msra.mxu0 0.0
        %623 = vmatprep.subr.mxu0 0.0
        %624 = vmatpush2.msra.mxu0 0.0
        %625 = vmatprep.subr.mxu0 0.0
        %626 = vmatpush2.msra.mxu0 0.0
        %627 = vmatprep.subr.mxu0 0.0
        %628 = vmatpush2.msra.mxu0 0.0
        %629 = vmatprep.subr.mxu0 0.0
        %630 = vmatpush2.msra.mxu0 0.0
        %631 = vmatprep.subr.mxu0 0.0
        %632 = vmatpush2.msra.mxu0 0.0
        %633 = vmatprep.subr.mxu0 0.0
        %634 = vmatpush2.msra.mxu0 0.0
        %635 = vmatprep.subr.mxu0 0.0
        %636 = vmatpush2.msra.mxu0 0.0
        %637 = vmatprep.subr.mxu0 0.0
        %638 = vmatpush2.msra.mxu0 0.0
        %639 = vmatprep.subr.mxu0 0.0
        %640 = vmatpush2.msra.mxu0 0.0
        %641 = vmatprep.subr.mxu0 0.0
        %642 = vmatpush2.msra.mxu0 0.0
        %643 = vmatprep.subr.mxu0 0.0
        %644 = vmatpush2.msra.mxu0 0.0
        %645 = vmatprep.subr.mxu0 0.0
        %646 = vmatpush2.msra.mxu0 0.0
        %647 = vmatprep.subr.mxu0 0.0
        %648 = vmatpush2.msra.mxu0 0.0
        %649 = vmatprep.subr.mxu0 0.0
        %650 = vmatpush2.msra.mxu0 0.0
        %651 = vmatprep.subr.mxu0 0.0
        %652 = vmatpush2.msra.mxu0 0.0
        %653 = vmatprep.mubr.f32.mxu0 0.0
        %654 = vmatmul.mubr.f32.gmra.mxu0 %v587
        %v655 = vpop.f32.mrf.mxu0
        %v656 = vadd.f32 %v583, %v655
        %v657 = vpop.f32.mrf.mxu0
        %658 = vdwg.mxu0
        %v659 = vld [vmem:[%s4] sm:$0xff]
        %v660 = vld [vmem:[%s4 + $0x8] sm:$0xff]
        %v661 = vld [vmem:[%s4 + $0x10] sm:$0xff]
        %v662 = vld [vmem:[%s4 + $0x18] sm:$0xff]
        %v663 = vld [vmem:[%s5] sm:$0x1]
        %v665 = vlaneseq
        %v666 = vshrl.u32 %v665, 7
        %v667 = vsub.s32 0, %v666
        %v668 = vrot.slane %v663, %v667
        %v671 = vsel %vm585, %v568, 0
        %673 = vmatprep.subr.mxu0 0.0
        %674 = vmatpush1.msra.mxu0 0.0
        %675 = vmatprep.subr.mxu0 0.0
        %676 = vmatpush1.msra.mxu0 0.0
        %677 = vmatprep.subr.mxu0 0.0
        %678 = vmatpush1.msra.mxu0 0.0
        %679 = vmatprep.subr.mxu0 0.0
        %680 = vmatpush1.msra.mxu0 0.0
        %681 = vmatprep.subr.mxu0 0.0
        %682 = vmatpush1.msra.mxu0 0.0
        %683 = vmatprep.subr.mxu0 0.0
        %684 = vmatpush1.msra.mxu0 0.0
        %685 = vmatprep.subr.mxu0 0.0
        %686 = vmatpush1.msra.mxu0 0.0
        %687 = vmatprep.subr.mxu0 0.0
        %688 = vmatpush1.msra.mxu0 0.0
        %689 = vmatprep.subr.mxu0 0.0
        %690 = vmatpush1.msra.mxu0 0.0
        %691 = vmatprep.subr.mxu0 0.0
        %692 = vmatpush1.msra.mxu0 0.0
        %693 = vmatprep.subr.mxu0 0.0
        %694 = vmatpush1.msra.mxu0 0.0
        %695 = vmatprep.subr.mxu0 0.0
        %696 = vmatpush1.msra.mxu0 0.0
        %697 = vmatprep.subr.mxu0 0.0
        %698 = vmatpush1.msra.mxu0 %v662
        %699 = vmatprep.subr.mxu0 0.0
        %700 = vmatpush1.msra.mxu0 %v661
        %701 = vmatprep.subr.mxu0 0.0
        %702 = vmatpush1.msra.mxu0 %v660
        %703 = vmatprep.subr.mxu0 0.0
        %704 = vmatpush1.msra.mxu0 %v659
        %705 = vmatprep.subr.mxu0 0.0
        %706 = vmatpush2.msra.mxu0 0.0
        %707 = vmatprep.subr.mxu0 0.0
        %708 = vmatpush2.msra.mxu0 0.0
        %709 = vmatprep.subr.mxu0 0.0
        %710 = vmatpush2.msra.mxu0 0.0
        %711 = vmatprep.subr.mxu0 0.0
        %712 = vmatpush2.msra.mxu0 0.0
        %713 = vmatprep.subr.mxu0 0.0
        %714 = vmatpush2.msra.mxu0 0.0
        %715 = vmatprep.subr.mxu0 0.0
        %716 = vmatpush2.msra.mxu0 0.0
        %717 = vmatprep.subr.mxu0 0.0
        %718 = vmatpush2.msra.mxu0 0.0
        %719 = vmatprep.subr.mxu0 0.0
        %720 = vmatpush2.msra.mxu0 0.0
        %721 = vmatprep.subr.mxu0 0.0
        %722 = vmatpush2.msra.mxu0 0.0
        %723 = vmatprep.subr.mxu0 0.0
        %724 = vmatpush2.msra.mxu0 0.0
        %725 = vmatprep.subr.mxu0 0.0
        %726 = vmatpush2.msra.mxu0 0.0
        %727 = vmatprep.subr.mxu0 0.0
        %728 = vmatpush2.msra.mxu0 0.0
        %729 = vmatprep.subr.mxu0 0.0
        %730 = vmatpush2.msra.mxu0 0.0
        %731 = vmatprep.subr.mxu0 0.0
        %732 = vmatpush2.msra.mxu0 0.0
        %733 = vmatprep.subr.mxu0 0.0
        %734 = vmatpush2.msra.mxu0 0.0
        %735 = vmatprep.subr.mxu0 0.0
        %736 = vmatpush2.msra.mxu0 0.0
        %737 = vmatprep.mubr.f32.mxu0 0.0
        %738 = vmatmul.mubr.f32.gmra.mxu0 %v671
        %v739 = vpop.f32.mrf.mxu0
        %v740 = vadd.f32 %v668, %v739
        %v741 = vpop.f32.mrf.mxu0
        %742 = vdwg.mxu0
        %744 = vrot.lane.b32.xlu0 %v740, 96
        %v745 = vpop.permute.xlu0 %744
        %v746 = vsel %vm585, %v740, 0
        %v748 = vsel %vm585, %v745, 0
        %750 = vmatprep.subr.mxu0 0.0
        %751 = vmatpush1.xpose.msra.mxu0 0.0
        %752 = vmatprep.subr.mxu0 0.0
        %753 = vmatpush1.xpose.msra.mxu0 0.0
        %754 = vmatprep.subr.mxu0 0.0
        %755 = vmatpush1.xpose.msra.mxu0 0.0
        %756 = vmatprep.subr.mxu0 0.0
        %757 = vmatpush1.xpose.msra.mxu0 0.0
        %758 = vmatprep.subr.mxu0 0.0
        %759 = vmatpush1.xpose.msra.mxu0 0.0
        %760 = vmatprep.subr.mxu0 0.0
        %761 = vmatpush1.xpose.msra.mxu0 0.0
        %762 = vmatprep.subr.mxu0 0.0
        %763 = vmatpush1.xpose.msra.mxu0 0.0
        %764 = vmatprep.subr.mxu0 0.0
        %765 = vmatpush1.xpose.msra.mxu0 0.0
        %766 = vmatprep.subr.mxu0 0.0
        %767 = vmatpush1.xpose.msra.mxu0 0.0
        %768 = vmatprep.subr.mxu0 0.0
        %769 = vmatpush1.xpose.msra.mxu0 0.0
        %770 = vmatprep.subr.mxu0 0.0
        %771 = vmatpush1.xpose.msra.mxu0 0.0
        %772 = vmatprep.subr.mxu0 0.0
        %773 = vmatpush1.xpose.msra.mxu0 0.0
        %774 = vmatprep.subr.mxu0 0.0
        %775 = vmatpush1.xpose.msra.mxu0 0.0
        %776 = vmatprep.subr.mxu0 0.0
        %777 = vmatpush1.xpose.msra.mxu0 0.0
        %778 = vmatprep.subr.mxu0 0.0
        %779 = vmatpush1.xpose.msra.mxu0 0.0
        %780 = vmatprep.subr.mxu0 0.0
        %781 = vmatpush1.xpose.msra.mxu0 %v748
        %782 = vmatprep.subr.mxu0 0.0
        %783 = vmatpush2.xpose.msra.mxu0 0.0
        %784 = vmatprep.subr.mxu0 0.0
        %785 = vmatpush2.xpose.msra.mxu0 0.0
        %786 = vmatprep.subr.mxu0 0.0
        %787 = vmatpush2.xpose.msra.mxu0 0.0
        %788 = vmatprep.subr.mxu0 0.0
        %789 = vmatpush2.xpose.msra.mxu0 0.0
        %790 = vmatprep.subr.mxu0 0.0
        %791 = vmatpush2.xpose.msra.mxu0 0.0
        %792 = vmatprep.subr.mxu0 0.0
        %793 = vmatpush2.xpose.msra.mxu0 0.0
        %794 = vmatprep.subr.mxu0 0.0
        %795 = vmatpush2.xpose.msra.mxu0 0.0
        %796 = vmatprep.subr.mxu0 0.0
        %797 = vmatpush2.xpose.msra.mxu0 0.0
        %798 = vmatprep.subr.mxu0 0.0
        %799 = vmatpush2.xpose.msra.mxu0 0.0
        %800 = vmatprep.subr.mxu0 0.0
        %801 = vmatpush2.xpose.msra.mxu0 0.0
        %802 = vmatprep.subr.mxu0 0.0
        %803 = vmatpush2.xpose.msra.mxu0 0.0
        %804 = vmatprep.subr.mxu0 0.0
        %805 = vmatpush2.xpose.msra.mxu0 0.0
        %806 = vmatprep.subr.mxu0 0.0
        %807 = vmatpush2.xpose.msra.mxu0 0.0
        %808 = vmatprep.subr.mxu0 0.0
        %809 = vmatpush2.xpose.msra.mxu0 0.0
        %810 = vmatprep.subr.mxu0 0.0
        %811 = vmatpush2.xpose.msra.mxu0 0.0
        %812 = vmatprep.subr.mxu0 0.0
        %813 = vmatpush2.xpose.msra.mxu0 0.0
        %814 = vmatprep.mubr.f32.mxu0 0.0
        %815 = vmatmul.mubr.f32.gmra.mxu0 %v746
        %v816 = vpop.f32.mrf.mxu0
        %v817 = vadd.f32 0.0, %v816
        %v818 = vpop.f32.mrf.mxu0
        %819 = vdwg.mxu0
        %v820 = vmul.f32 %v817, 0.17677669
        %v821 = vadd.f32 %v820, %v570
        %vm822 = vcmask 64512
        %v823 = vsel %vm822, %v821, -inf
        %824 = vmax.xlane.f32.xlu0 %v823
        %v825 = vpop.xlane.xlu0 %824
        %v826 = vsub.f32 %v821, %v825
        %v827 = vmul.f32 %v826, 1.442695
        %v828 = vpow.pop %v827
        %v829 = vsel %vm822, %v828, 0.0
        %830 = vadd.xlane.f32.xlu0 %v829
        %v831 = vpop.xlane.xlu0 %830
        %v832 = vrcp.pop %v831
        %v833 = vmul.f32 %v828, %v832
        %834 = vrot.lane.b32.xlu0 %v740, 64
        %v835 = vpop.permute.xlu0 %834
        %v838 = vsel %vm822, %v833, 0
        %840 = vmatprep.subr.mxu0 0.0
        %841 = vmatpush1.msra.mxu0 0.0
        %842 = vmatprep.subr.mxu0 0.0
        %843 = vmatpush1.msra.mxu0 0.0
        %844 = vmatprep.subr.mxu0 0.0
        %845 = vmatpush1.msra.mxu0 0.0
        %846 = vmatprep.subr.mxu0 0.0
        %847 = vmatpush1.msra.mxu0 0.0
        %848 = vmatprep.subr.mxu0 0.0
        %849 = vmatpush1.msra.mxu0 0.0
        %850 = vmatprep.subr.mxu0 0.0
        %851 = vmatpush1.msra.mxu0 0.0
        %852 = vmatprep.subr.mxu0 0.0
        %853 = vmatpush1.msra.mxu0 0.0
        %854 = vmatprep.subr.mxu0 0.0
        %855 = vmatpush1.msra.mxu0 0.0
        %856 = vmatprep.subr.mxu0 0.0
        %857 = vmatpush1.msra.mxu0 0.0
        %858 = vmatprep.subr.mxu0 0.0
        %859 = vmatpush1.msra.mxu0 0.0
        %860 = vmatprep.subr.mxu0 0.0
        %861 = vmatpush1.msra.mxu0 0.0
        %862 = vmatprep.subr.mxu0 0.0
        %863 = vmatpush1.msra.mxu0 0.0
        %864 = vmatprep.subr.mxu0 0.0
        %865 = vmatpush1.msra.mxu0 0.0
        %866 = vmatprep.subr.mxu0 0.0
        %867 = vmatpush1.msra.mxu0 0.0
        %868 = vmatprep.subr.mxu0 0.0
        %869 = vmatpush1.msra.mxu0 0.0
        %870 = vmatprep.subr.mxu0 0.0
        %871 = vmatpush1.msra.mxu0 %v835
        %872 = vmatprep.subr.mxu0 0.0
        %873 = vmatpush2.msra.mxu0 0.0
        %874 = vmatprep.subr.mxu0 0.0
        %875 = vmatpush2.msra.mxu0 0.0
        %876 = vmatprep.subr.mxu0 0.0
        %877 = vmatpush2.msra.mxu0 0.0
        %878 = vmatprep.subr.mxu0 0.0
        %879 = vmatpush2.msra.mxu0 0.0
        %880 = vmatprep.subr.mxu0 0.0
        %881 = vmatpush2.msra.mxu0 0.0
        %882 = vmatprep.subr.mxu0 0.0
        %883 = vmatpush2.msra.mxu0 0.0
        %884 = vmatprep.subr.mxu0 0.0
        %885 = vmatpush2.msra.mxu0 0.0
        %886 = vmatprep.subr.mxu0 0.0
        %887 = vmatpush2.msra.mxu0 0.0
        %888 = vmatprep.subr.mxu0 0.0
        %889 = vmatpush2.msra.mxu0 0.0
        %890 = vmatprep.subr.mxu0 0.0
        %891 = vmatpush2.msra.mxu0 0.0
        %892 = vmatprep.subr.mxu0 0.0
        %893 = vmatpush2.msra.mxu0 0.0
        %894 = vmatprep.subr.mxu0 0.0
        %895 = vmatpush2.msra.mxu0 0.0
        %896 = vmatprep.subr.mxu0 0.0
        %897 = vmatpush2.msra.mxu0 0.0
        %898 = vmatprep.subr.mxu0 0.0
        %899 = vmatpush2.msra.mxu0 0.0
        %900 = vmatprep.subr.mxu0 0.0
        %901 = vmatpush2.msra.mxu0 0.0
        %902 = vmatprep.subr.mxu0 0.0
        %903 = vmatpush2.msra.mxu0 0.0
        %904 = vmatprep.mubr.f32.mxu0 0.0
        %905 = vmatmul.mubr.f32.gmra.mxu0 %v838
        %v906 = vpop.f32.mrf.mxu0
        %v907 = vadd.f32 %v568, %v906
        %v908 = vpop.f32.mrf.mxu0
        %909 = vdwg.mxu0
        %v910 = vsel %vm585, %v907, 0.0
        %911 = vadd.xlane.f32.xlu0 %v910
        %v912 = vpop.xlane.xlu0 %911
        %v913 = vrcp.pop 32.0
        %v914 = vmul.f32 %v912, %v913
        %v915 = vsub.f32 %v907, %v914
        %v916 = vmul.f32 %v915, %v915
        %v917 = vsel %vm585, %v916, 0.0
        %918 = vadd.xlane.f32.xlu0 %v917
        %v919 = vpop.xlane.xlu0 %918
        %v920 = vmul.f32 %v919, %v913
        %v921 = vadd.f32 %v920, 1e-05
        %v922 = vrsqrt.pop %v921
        %v923 = vmul.f32 %v915, %v922
        %v925 = vlaneseq
        %v926 = vshrl.u32 %v925, 7
        %v927 = vsub.s32 0, %v926
        %v928 = vrot.slane %v572, %v927
        %v930 = vmul.f32 %v923, %v928
        %v932 = vlaneseq
        %v933 = vshrl.u32 %v932, 7
        %v934 = vsub.s32 0, %v933
        %v935 = vrot.slane %v573, %v934
        %v937 = vadd.f32 %v930, %v935
        %v938 = vld [vmem:[%s6] sm:$0xff]
        %v939 = vld [vmem:[%s6 + $0x8] sm:$0xff]
        %v940 = vld [vmem:[%s6 + $0x10] sm:$0xff]
        %v941 = vld [vmem:[%s6 + $0x18] sm:$0xff]
        %v942 = vld [vmem:[%s7] sm:$0x1]
        %v944 = vlaneseq
        %v945 = vshrl.u32 %v944, 7
        %v946 = vsub.s32 0, %v945
        %v947 = vrot.slane %v942, %v946
        %v950 = vsel %vm585, %v937, 0
        %952 = vmatprep.subr.mxu0 0.0
        %953 = vmatpush1.msra.mxu0 0.0
        %954 = vmatprep.subr.mxu0 0.0
        %955 = vmatpush1.msra.mxu0 0.0
        %956 = vmatprep.subr.mxu0 0.0
        %957 = vmatpush1.msra.mxu0 0.0
        %958 = vmatprep.subr.mxu0 0.0
        %959 = vmatpush1.msra.mxu0 0.0
        %960 = vmatprep.subr.mxu0 0.0
        %961 = vmatpush1.msra.mxu0 0.0
        %962 = vmatprep.subr.mxu0 0.0
        %963 = vmatpush1.msra.mxu0 0.0
        %964 = vmatprep.subr.mxu0 0.0
        %965 = vmatpush1.msra.mxu0 0.0
        %966 = vmatprep.subr.mxu0 0.0
        %967 = vmatpush1.msra.mxu0 0.0
        %968 = vmatprep.subr.mxu0 0.0
        %969 = vmatpush1.msra.mxu0 0.0
        %970 = vmatprep.subr.mxu0 0.0
        %971 = vmatpush1.msra.mxu0 0.0
        %972 = vmatprep.subr.mxu0 0.0
        %973 = vmatpush1.msra.mxu0 0.0
        %974 = vmatprep.subr.mxu0 0.0
        %975 = vmatpush1.msra.mxu0 0.0
        %976 = vmatprep.subr.mxu0 0.0
        %977 = vmatpush1.msra.mxu0 %v941
        %978 = vmatprep.subr.mxu0 0.0
        %979 = vmatpush1.msra.mxu0 %v940
        %980 = vmatprep.subr.mxu0 0.0
        %981 = vmatpush1.msra.mxu0 %v939
        %982 = vmatprep.subr.mxu0 0.0
        %983 = vmatpush1.msra.mxu0 %v938
        %984 = vmatprep.subr.mxu0 0.0
        %985 = vmatpush2.msra.mxu0 0.0
        %986 = vmatprep.subr.mxu0 0.0
        %987 = vmatpush2.msra.mxu0 0.0
        %988 = vmatprep.subr.mxu0 0.0
        %989 = vmatpush2.msra.mxu0 0.0
        %990 = vmatprep.subr.mxu0 0.0
        %991 = vmatpush2.msra.mxu0 0.0
        %992 = vmatprep.subr.mxu0 0.0
        %993 = vmatpush2.msra.mxu0 0.0
        %994 = vmatprep.subr.mxu0 0.0
        %995 = vmatpush2.msra.mxu0 0.0
        %996 = vmatprep.subr.mxu0 0.0
        %997 = vmatpush2.msra.mxu0 0.0
        %998 = vmatprep.subr.mxu0 0.0
        %999 = vmatpush2.msra.mxu0 0.0
        %1000 = vmatprep.subr.mxu0 0.0
        %1001 = vmatpush2.msra.mxu0 0.0
        %1002 = vmatprep.subr.mxu0 0.0
        %1003 = vmatpush2.msra.mxu0 0.0
        %1004 = vmatprep.subr.mxu0 0.0
        %1005 = vmatpush2.msra.mxu0 0.0
        %1006 = vmatprep.subr.mxu0 0.0
        %1007 = vmatpush2.msra.mxu0 0.0
        %1008 = vmatprep.subr.mxu0 0.0
        %1009 = vmatpush2.msra.mxu0 0.0
        %1010 = vmatprep.subr.mxu0 0.0
        %1011 = vmatpush2.msra.mxu0 0.0
        %1012 = vmatprep.subr.mxu0 0.0
        %1013 = vmatpush2.msra.mxu0 0.0
        %1014 = vmatprep.subr.mxu0 0.0
        %1015 = vmatpush2.msra.mxu0 0.0
        %1016 = vmatprep.mubr.f32.mxu0 0.0
        %1017 = vmatmul.mubr.f32.gmra.mxu0 %v950
        %v1018 = vpop.f32.mrf.mxu0
        %v1019 = vadd.f32 %v947, %v1018
        %v1020 = vpop.f32.mrf.mxu0
        %1021 = vdwg.mxu0
        %v1023 = vsel %vm585, %v1019, 0
        %v1026 = vsel %vm585, %v656, 0
        %1028 = vmatprep.subr.mxu0 0.0
        %1029 = vmatpush1.xpose.msra.mxu0 0.0
        %1030 = vmatprep.subr.mxu0 0.0
        %1031 = vmatpush1.xpose.msra.mxu0 0.0
        %1032 = vmatprep.subr.mxu0 0.0
        %1033 = vmatpush1.xpose.msra.mxu0 0.0
        %1034 = vmatprep.subr.mxu0 0.0
        %1035 = vmatpush1.xpose.msra.mxu0 0.0
        %1036 = vmatprep.subr.mxu0 0.0
        %1037 = vmatpush1.xpose.msra.mxu0 0.0
        %1038 = vmatprep.subr.mxu0 0.0
        %1039 = vmatpush1.xpose.msra.mxu0 0.0
        %1040 = vmatprep.subr.mxu0 0.0
        %1041 = vmatpush1.xpose.msra.mxu0 0.0
        %1042 = vmatprep.subr.mxu0 0.0
        %1043 = vmatpush1.xpose.msra.mxu0 0.0
        %1044 = vmatprep.subr.mxu0 0.0
        %1045 = vmatpush1.xpose.msra.mxu0 0.0
        %1046 = vmatprep.subr.mxu0 0.0
        %1047 = vmatpush1.xpose.msra.mxu0 0.0
        %1048 = vmatprep.subr.mxu0 0.0
        %1049 = vmatpush1.xpose.msra.mxu0 0.0
        %1050 = vmatprep.subr.mxu0 0.0
        %1051 = vmatpush1.xpose.msra.mxu0 0.0
        %1052 = vmatprep.subr.mxu0 0.0
        %1053 = vmatpush1.xpose.msra.mxu0 0.0
        %1054 = vmatprep.subr.mxu0 0.0
        %1055 = vmatpush1.xpose.msra.mxu0 0.0
        %1056 = vmatprep.subr.mxu0 0.0
        %1057 = vmatpush1.xpose.msra.mxu0 0.0
        %1058 = vmatprep.subr.mxu0 0.0
        %1059 = vmatpush1.xpose.msra.mxu0 %v1026
        %1060 = vmatprep.subr.mxu0 0.0
        %1061 = vmatpush2.xpose.msra.mxu0 0.0
        %1062 = vmatprep.subr.mxu0 0.0
        %1063 = vmatpush2.xpose.msra.mxu0 0.0
        %1064 = vmatprep.subr.mxu0 0.0
        %1065 = vmatpush2.xpose.msra.mxu0 0.0
        %1066 = vmatprep.subr.mxu0 0.0
        %1067 = vmatpush2.xpose.msra.mxu0 0.0
        %1068 = vmatprep.subr.mxu0 0.0
        %1069 = vmatpush2.xpose.msra.mxu0 0.0
        %1070 = vmatprep.subr.mxu0 0.0
        %1071 = vmatpush2.xpose.msra.mxu0 0.0
        %1072 = vmatprep.subr.mxu0 0.0
        %1073 = vmatpush2.xpose.msra.mxu0 0.0
        %1074 = vmatprep.subr.mxu0 0.0
        %1075 = vmatpush2.xpose.msra.mxu0 0.0
        %1076 = vmatprep.subr.mxu0 0.0
        %1077 = vmatpush2.xpose.msra.mxu0 0.0
        %1078 = vmatprep.subr.mxu0 0.0
        %1079 = vmatpush2.xpose.msra.mxu0 0.0
        %1080 = vmatprep.subr.mxu0 0.0
        %1081 = vmatpush2.xpose.msra.mxu0 0.0
        %1082 = vmatprep.subr.mxu0 0.0
        %1083 = vmatpush2.xpose.msra.mxu0 0.0
        %1084 = vmatprep.subr.mxu0 0.0
        %1085 = vmatpush2.xpose.msra.mxu0 0.0
        %1086 = vmatprep.subr.mxu0 0.0
        %1087 = vmatpush2.xpose.msra.mxu0 0.0
        %1088 = vmatprep.subr.mxu0 0.0
        %1089 = vmatpush2.xpose.msra.mxu0 0.0
        %1090 = vmatprep.subr.mxu0 0.0
        %1091 = vmatpush2.xpose.msra.mxu0 0.0
        %1092 = vmatprep.mubr.f32.mxu0 0.0
        %1093 = vmatmul.mubr.f32.gmra.mxu0 %v1023
        %v1094 = vpop.f32.mrf.mxu0
        %v1095 = vadd.f32 0.0, %v1094
        %v1096 = vpop.f32.mrf.mxu0
        %1097 = vdwg.mxu0
        %v1098 = vmul.f32 %v1095, 0.17677669
        %v1099 = vadd.f32 %v1098, %v571
        %v1100 = vsel %vm822, %v1099, -inf
        %1101 = vmax.xlane.f32.xlu0 %v1100
        %v1102 = vpop.xlane.xlu0 %1101
        %v1103 = vsub.f32 %v1099, %v1102
        %v1104 = vmul.f32 %v1103, 1.442695
        %v1105 = vpow.pop %v1104
        %v1106 = vsel %vm822, %v1105, 0.0
        %1107 = vadd.xlane.f32.xlu0 %v1106
        %v1108 = vpop.xlane.xlu0 %1107
        %v1109 = vrcp.pop %v1108
        %v1110 = vmul.f32 %v1105, %v1109
        %1111 = vrot.lane.b32.xlu0 %v656, 96
        %v1112 = vpop.permute.xlu0 %1111
        %v1115 = vsel %vm822, %v1110, 0
        %1117 = vmatprep.subr.mxu0 0.0
        %1118 = vmatpush1.msra.mxu0 0.0
        %1119 = vmatprep.subr.mxu0 0.0
        %1120 = vmatpush1.msra.mxu0 0.0
        %1121 = vmatprep.subr.mxu0 0.0
        %1122 = vmatpush1.msra.mxu0 0.0
        %1123 = vmatprep.subr.mxu0 0.0
        %1124 = vmatpush1.msra.mxu0 0.0
        %1125 = vmatprep.subr.mxu0 0.0
        %1126 = vmatpush1.msra.mxu0 0.0
        %1127 = vmatprep.subr.mxu0 0.0
        %1128 = vmatpush1.msra.mxu0 0.0
        %1129 = vmatprep.subr.mxu0 0.0
        %1130 = vmatpush1.msra.mxu0 0.0
        %1131 = vmatprep.subr.mxu0 0.0
        %1132 = vmatpush1.msra.mxu0 0.0
        %1133 = vmatprep.subr.mxu0 0.0
        %1134 = vmatpush1.msra.mxu0 0.0
        %1135 = vmatprep.subr.mxu0 0.0
        %1136 = vmatpush1.msra.mxu0 0.0
        %1137 = vmatprep.subr.mxu0 0.0
        %1138 = vmatpush1.msra.mxu0 0.0
        %1139 = vmatprep.subr.mxu0 0.0
        %1140 = vmatpush1.msra.mxu0 0.0
        %1141 = vmatprep.subr.mxu0 0.0
        %1142 = vmatpush1.msra.mxu0 0.0
        %1143 = vmatprep.subr.mxu0 0.0
        %1144 = vmatpush1.msra.mxu0 0.0
        %1145 = vmatprep.subr.mxu0 0.0
        %1146 = vmatpush1.msra.mxu0 0.0
        %1147 = vmatprep.subr.mxu0 0.0
        %1148 = vmatpush1.msra.mxu0 %v1112
        %1149 = vmatprep.subr.mxu0 0.0
        %1150 = vmatpush2.msra.mxu0 0.0
        %1151 = vmatprep.subr.mxu0 0.0
        %1152 = vmatpush2.msra.mxu0 0.0
        %1153 = vmatprep.subr.mxu0 0.0
        %1154 = vmatpush2.msra.mxu0 0.0
        %1155 = vmatprep.subr.mxu0 0.0
        %1156 = vmatpush2.msra.mxu0 0.0
        %1157 = vmatprep.subr.mxu0 0.0
        %1158 = vmatpush2.msra.mxu0 0.0
        %1159 = vmatprep.subr.mxu0 0.0
        %1160 = vmatpush2.msra.mxu0 0.0
        %1161 = vmatprep.subr.mxu0 0.0
        %1162 = vmatpush2.msra.mxu0 0.0
        %1163 = vmatprep.subr.mxu0 0.0
        %1164 = vmatpush2.msra.mxu0 0.0
        %1165 = vmatprep.subr.mxu0 0.0
        %1166 = vmatpush2.msra.mxu0 0.0
        %1167 = vmatprep.subr.mxu0 0.0
        %1168 = vmatpush2.msra.mxu0 0.0
        %1169 = vmatprep.subr.mxu0 0.0
        %1170 = vmatpush2.msra.mxu0 0.0
        %1171 = vmatprep.subr.mxu0 0.0
        %1172 = vmatpush2.msra.mxu0 0.0
        %1173 = vmatprep.subr.mxu0 0.0
        %1174 = vmatpush2.msra.mxu0 0.0
        %1175 = vmatprep.subr.mxu0 0.0
        %1176 = vmatpush2.msra.mxu0 0.0
        %1177 = vmatprep.subr.mxu0 0.0
        %1178 = vmatpush2.msra.mxu0 0.0
        %1179 = vmatprep.subr.mxu0 0.0
        %1180 = vmatpush2.msra.mxu0 0.0
        %1181 = vmatprep.mubr.f32.mxu0 0.0
        %1182 = vmatmul.mubr.f32.gmra.mxu0 %v1115
        %v1183 = vpop.f32.mrf.mxu0
        %v1184 = vadd.f32 0.0, %v1183
        %v1185 = vpop.f32.mrf.mxu0
        %1186 = vdwg.mxu0
        %v1187 = vadd.f32 %v1184, %v937
        %v1188 = vsel %vm585, %v1187, 0.0
        %1189 = vadd.xlane.f32.xlu0 %v1188
        %v1190 = vpop.xlane.xlu0 %1189
        %v1191 = vmul.f32 %v1190, %v913
        %v1192 = vsub.f32 %v1187, %v1191
        %v1193 = vmul.f32 %v1192, %v1192
        %v1194 = vsel %vm585, %v1193, 0.0
        %1195 = vadd.xlane.f32.xlu0 %v1194
        %v1196 = vpop.xlane.xlu0 %1195
        %v1197 = vmul.f32 %v1196, %v913
        %v1198 = vadd.f32 %v1197, 1e-05
        %v1199 = vrsqrt.pop %v1198
        %v1200 = vmul.f32 %v1192, %v1199
        %v1201 = vmul.f32 %v1200, %v928
        %v1202 = vadd.f32 %v1201, %v935
        %v1203 = vld [vmem:[%s10] sm:$0xff]
        %v1204 = vld [vmem:[%s10 + $0x8] sm:$0xff]
        %v1205 = vld [vmem:[%s10 + $0x10] sm:$0xff]
        %v1206 = vld [vmem:[%s10 + $0x18] sm:$0xff]
        %v1207 = vld [vmem:[%s11] sm:$0x1]
        %v1209 = vlaneseq
        %v1210 = vshrl.u32 %v1209, 7
        %v1211 = vsub.s32 0, %v1210
        %v1212 = vrot.slane %v1207, %v1211
        %v1215 = vsel %vm585, %v1184, 0
        %1217 = vmatprep.subr.mxu0 0.0
        %1218 = vmatpush1.msra.mxu0 0.0
        %1219 = vmatprep.subr.mxu0 0.0
        %1220 = vmatpush1.msra.mxu0 0.0
        %1221 = vmatprep.subr.mxu0 0.0
        %1222 = vmatpush1.msra.mxu0 0.0
        %1223 = vmatprep.subr.mxu0 0.0
        %1224 = vmatpush1.msra.mxu0 0.0
        %1225 = vmatprep.subr.mxu0 0.0
        %1226 = vmatpush1.msra.mxu0 0.0
        %1227 = vmatprep.subr.mxu0 0.0
        %1228 = vmatpush1.msra.mxu0 0.0
        %1229 = vmatprep.subr.mxu0 0.0
        %1230 = vmatpush1.msra.mxu0 0.0
        %1231 = vmatprep.subr.mxu0 0.0
        %1232 = vmatpush1.msra.mxu0 0.0
        %1233 = vmatprep.subr.mxu0 0.0
        %1234 = vmatpush1.msra.mxu0 0.0
        %1235 = vmatprep.subr.mxu0 0.0
        %1236 = vmatpush1.msra.mxu0 0.0
        %1237 = vmatprep.subr.mxu0 0.0
        %1238 = vmatpush1.msra.mxu0 0.0
        %1239 = vmatprep.subr.mxu0 0.0
        %1240 = vmatpush1.msra.mxu0 0.0
        %1241 = vmatprep.subr.mxu0 0.0
        %1242 = vmatpush1.msra.mxu0 %v1206
        %1243 = vmatprep.subr.mxu0 0.0
        %1244 = vmatpush1.msra.mxu0 %v1205
        %1245 = vmatprep.subr.mxu0 0.0
        %1246 = vmatpush1.msra.mxu0 %v1204
        %1247 = vmatprep.subr.mxu0 0.0
        %1248 = vmatpush1.msra.mxu0 %v1203
        %1249 = vmatprep.subr.mxu0 0.0
        %1250 = vmatpush2.msra.mxu0 0.0
        %1251 = vmatprep.subr.mxu0 0.0
        %1252 = vmatpush2.msra.mxu0 0.0
        %1253 = vmatprep.subr.mxu0 0.0
        %1254 = vmatpush2.msra.mxu0 0.0
        %1255 = vmatprep.subr.mxu0 0.0
        %1256 = vmatpush2.msra.mxu0 0.0
        %1257 = vmatprep.subr.mxu0 0.0
        %1258 = vmatpush2.msra.mxu0 0.0
        %1259 = vmatprep.subr.mxu0 0.0
        %1260 = vmatpush2.msra.mxu0 0.0
        %1261 = vmatprep.subr.mxu0 0.0
        %1262 = vmatpush2.msra.mxu0 0.0
        %1263 = vmatprep.subr.mxu0 0.0
        %1264 = vmatpush2.msra.mxu0 0.0
        %1265 = vmatprep.subr.mxu0 0.0
        %1266 = vmatpush2.msra.mxu0 0.0
        %1267 = vmatprep.subr.mxu0 0.0
        %1268 = vmatpush2.msra.mxu0 0.0
        %1269 = vmatprep.subr.mxu0 0.0
        %1270 = vmatpush2.msra.mxu0 0.0
        %1271 = vmatprep.subr.mxu0 0.0
        %1272 = vmatpush2.msra.mxu0 0.0
        %1273 = vmatprep.subr.mxu0 0.0
        %1274 = vmatpush2.msra.mxu0 0.0
        %1275 = vmatprep.subr.mxu0 0.0
        %1276 = vmatpush2.msra.mxu0 0.0
        %1277 = vmatprep.subr.mxu0 0.0
        %1278 = vmatpush2.msra.mxu0 0.0
        %1279 = vmatprep.subr.mxu0 0.0
        %1280 = vmatpush2.msra.mxu0 0.0
        %1281 = vmatprep.mubr.f32.mxu0 0.0
        %1282 = vmatmul.mubr.f32.gmra.mxu0 %v1215
        %v1283 = vpop.f32.mrf.mxu0
        %v1284 = vadd.f32 %v1212, %v1283
        %v1285 = vpop.f32.mrf.mxu0
        %1286 = vdwg.mxu0
        %v1287 = vmax.f32 %v1284, 0.0
        %v1288 = vld [vmem:[%s12] sm:$0xff]
        %v1289 = vld [vmem:[%s12 + $0x8] sm:$0xff]
        %v1290 = vld [vmem:[%s12 + $0x10] sm:$0xff]
        %v1291 = vld [vmem:[%s12 + $0x18] sm:$0xff]
        %v1292 = vld [vmem:[%s12 + $0x20] sm:$0xff]
        %v1293 = vld [vmem:[%s12 + $0x28] sm:$0xff]
        %v1294 = vld [vmem:[%s12 + $0x30] sm:$0xff]
        %v1295 = vld [vmem:[%s12 + $0x38] sm:$0xff]
        %v1296 = vld [vmem:[%s13] sm:$0x1]
        %v1298 = vlaneseq
        %v1299 = vshrl.u32 %v1298, 7
        %v1300 = vsub.s32 0, %v1299
        %v1301 = vrot.slane %v1296, %v1300
        %vm1303 = vcmask 523264
        %v1305 = vsel %vm1303, %v1287, 0
        %1307 = vmatprep.subr.mxu0 0.0
        %1308 = vmatpush1.msra.mxu0 0.0
        %1309 = vmatprep.subr.mxu0 0.0
        %1310 = vmatpush1.msra.mxu0 0.0
        %1311 = vmatprep.subr.mxu0 0.0
        %1312 = vmatpush1.msra.mxu0 0.0
        %1313 = vmatprep.subr.mxu0 0.0
        %1314 = vmatpush1.msra.mxu0 0.0
        %1315 = vmatprep.subr.mxu0 0.0
        %1316 = vmatpush1.msra.mxu0 0.0
        %1317 = vmatprep.subr.mxu0 0.0
        %1318 = vmatpush1.msra.mxu0 0.0
        %1319 = vmatprep.subr.mxu0 0.0
        %1320 = vmatpush1.msra.mxu0 0.0
        %1321 = vmatprep.subr.mxu0 0.0
        %1322 = vmatpush1.msra.mxu0 0.0
        %1323 = vmatprep.subr.mxu0 0.0
        %1324 = vmatpush1.msra.mxu0 %v1295
        %1325 = vmatprep.subr.mxu0 0.0
        %1326 = vmatpush1.msra.mxu0 %v1294
        %1327 = vmatprep.subr.mxu0 0.0
        %1328 = vmatpush1.msra.mxu0 %v1293
        %1329 = vmatprep.subr.mxu0 0.0
        %1330 = vmatpush1.msra.mxu0 %v1292
        %1331 = vmatprep.subr.mxu0 0.0
        %1332 = vmatpush1.msra.mxu0 %v1291
        %1333 = vmatprep.subr.mxu0 0.0
        %1334 = vmatpush1.msra.mxu0 %v1290
        %1335 = vmatprep.subr.mxu0 0.0
        %1336 = vmatpush1.msra.mxu0 %v1289
        %1337 = vmatprep.subr.mxu0 0.0
        %1338 = vmatpush1.msra.mxu0 %v1288
        %1339 = vmatprep.subr.mxu0 0.0
        %1340 = vmatpush2.msra.mxu0 0.0
        %1341 = vmatprep.subr.mxu0 0.0
        %1342 = vmatpush2.msra.mxu0 0.0
        %1343 = vmatprep.subr.mxu0 0.0
        %1344 = vmatpush2.msra.mxu0 0.0
        %1345 = vmatprep.subr.mxu0 0.0
        %1346 = vmatpush2.msra.mxu0 0.0
        %1347 = vmatprep.subr.mxu0 0.0
        %1348 = vmatpush2.msra.mxu0 0.0
        %1349 = vmatprep.subr.mxu0 0.0
        %1350 = vmatpush2.msra.mxu0 0.0
        %1351 = vmatprep.subr.mxu0 0.0
        %1352 = vmatpush2.msra.mxu0 0.0
        %1353 = vmatprep.subr.mxu0 0.0
        %1354 = vmatpush2.msra.mxu0 0.0
        %1355 = vmatprep.subr.mxu0 0.0
        %1356 = vmatpush2.msra.mxu0 0.0
        %1357 = vmatprep.subr.mxu0 0.0
        %1358 = vmatpush2.msra.mxu0 0.0
        %1359 = vmatprep.subr.mxu0 0.0
        %1360 = vmatpush2.msra.mxu0 0.0
        %1361 = vmatprep.subr.mxu0 0.0
        %1362 = vmatpush2.msra.mxu0 0.0
        %1363 = vmatprep.subr.mxu0 0.0
        %1364 = vmatpush2.msra.mxu0 0.0
        %1365 = vmatprep.subr.mxu0 0.0
        %1366 = vmatpush2.msra.mxu0 0.0
        %1367 = vmatprep.subr.mxu0 0.0
        %1368 = vmatpush2.msra.mxu0 0.0
        %1369 = vmatprep.subr.mxu0 0.0
        %1370 = vmatpush2.msra.mxu0 0.0
        %1371 = vmatprep.mubr.f32.mxu0 0.0
        %1372 = vmatmul.mubr.f32.gmra.mxu0 %v1305
        %v1373 = vpop.f32.mrf.mxu0
        %v1374 = vadd.f32 %v1301, %v1373
        %v1375 = vpop.f32.mrf.mxu0
        %1376 = vdwg.mxu0
        %v1377 = vadd.f32 %v1374, %v1202
        %v1378 = vsel %vm585, %v1377, 0.0
        %1379 = vadd.xlane.f32.xlu0 %v1378
        %v1380 = vpop.xlane.xlu0 %1379
        %v1381 = vmul.f32 %v1380, %v913
        %v1382 = vsub.f32 %v1377, %v1381
        %v1383 = vmul.f32 %v1382, %v1382
        %v1384 = vsel %vm585, %v1383, 0.0
        %1385 = vadd.xlane.f32.xlu0 %v1384
        %v1386 = vpop.xlane.xlu0 %1385
        %v1387 = vmul.f32 %v1386, %v913
        %v1388 = vadd.f32 %v1387, 1e-05
        %v1389 = vrsqrt.pop %v1388
        %v1390 = vmul.f32 %v1382, %v1389
        %v1391 = vmul.f32 %v1390, %v928
        %v1392 = vadd.f32 %v1391, %v935
        %v1394 = vsel %vm585, %v1392, 0
        %1396 = vmatprep.subr.mxu0 0.0
        %1397 = vmatpush1.msra.mxu0 0.0
        %1398 = vmatprep.subr.mxu0 0.0
        %1399 = vmatpush1.msra.mxu0 0.0
        %1400 = vmatprep.subr.mxu0 0.0
        %1401 = vmatpush1.msra.mxu0 0.0
        %1402 = vmatprep.subr.mxu0 0.0
        %1403 = vmatpush1.msra.mxu0 0.0
        %1404 = vmatprep.subr.mxu0 0.0
        %1405 = vmatpush1.msra.mxu0 0.0
        %1406 = vmatprep.subr.mxu0 0.0
        %1407 = vmatpush1.msra.mxu0 0.0
        %1408 = vmatprep.subr.mxu0 0.0
        %1409 = vmatpush1.msra.mxu0 0.0
        %1410 = vmatprep.subr.mxu0 0.0
        %1411 = vmatpush1.msra.mxu0 0.0
        %1412 = vmatprep.subr.mxu0 0.0
        %1413 = vmatpush1.msra.mxu0 0.0
        %1414 = vmatprep.subr.mxu0 0.0
        %1415 = vmatpush1.msra.mxu0 0.0
        %1416 = vmatprep.subr.mxu0 0.0
        %1417 = vmatpush1.msra.mxu0 0.0
        %1418 = vmatprep.subr.mxu0 0.0
        %1419 = vmatpush1.msra.mxu0 0.0
        %1420 = vmatprep.subr.mxu0 0.0
        %1421 = vmatpush1.msra.mxu0 %v662
        %1422 = vmatprep.subr.mxu0 0.0
        %1423 = vmatpush1.msra.mxu0 %v661
        %1424 = vmatprep.subr.mxu0 0.0
        %1425 = vmatpush1.msra.mxu0 %v660
        %1426 = vmatprep.subr.mxu0 0.0
        %1427 = vmatpush1.msra.mxu0 %v659
        %1428 = vmatprep.subr.mxu0 0.0
        %1429 = vmatpush2.msra.mxu0 0.0
        %1430 = vmatprep.subr.mxu0 0.0
        %1431 = vmatpush2.msra.mxu0 0.0
        %1432 = vmatprep.subr.mxu0 0.0
        %1433 = vmatpush2.msra.mxu0 0.0
        %1434 = vmatprep.subr.mxu0 0.0
        %1435 = vmatpush2.msra.mxu0 0.0
        %1436 = vmatprep.subr.mxu0 0.0
        %1437 = vmatpush2.msra.mxu0 0.0
        %1438 = vmatprep.subr.mxu0 0.0
        %1439 = vmatpush2.msra.mxu0 0.0
        %1440 = vmatprep.subr.mxu0 0.0
        %1441 = vmatpush2.msra.mxu0 0.0
        %1442 = vmatprep.subr.mxu0 0.0
        %1443 = vmatpush2.msra.mxu0 0.0
        %1444 = vmatprep.subr.mxu0 0.0
        %1445 = vmatpush2.msra.mxu0 0.0
        %1446 = vmatprep.subr.mxu0 0.0
        %1447 = vmatpush2.msra.mxu0 0.0
        %1448 = vmatprep.subr.mxu0 0.0
        %1449 = vmatpush2.msra.mxu0 0.0
        %1450 = vmatprep.subr.mxu0 0.0
        %1451 = vmatpush2.msra.mxu0 0.0
        %1452 = vmatprep.subr.mxu0 0.0
        %1453 = vmatpush2.msra.mxu0 0.0
        %1454 = vmatprep.subr.mxu0 0.0
        %1455 = vmatpush2.msra.mxu0 0.0
        %1456 = vmatprep.subr.mxu0 0.0
        %1457 = vmatpush2.msra.mxu0 0.0
        %1458 = vmatprep.subr.mxu0 0.0
        %1459 = vmatpush2.msra.mxu0 0.0
        %1460 = vmatprep.mubr.f32.mxu0 0.0
        %1461 = vmatmul.mubr.f32.gmra.mxu0 %v1394
        %v1462 = vpop.f32.mrf.mxu0
        %v1463 = vadd.f32 %v668, %v1462
        %v1464 = vpop.f32.mrf.mxu0
        %1465 = vdwg.mxu0
        %1467 = vrot.lane.b32.xlu0 %v1463, 96
        %v1468 = vpop.permute.xlu0 %1467
        %v1469 = vsel %vm585, %v1463, 0
        %v1471 = vsel %vm585, %v1468, 0
        %1473 = vmatprep.subr.mxu0 0.0
        %1474 = vmatpush1.xpose.msra.mxu0 0.0
        %1475 = vmatprep.subr.mxu0 0.0
        %1476 = vmatpush1.xpose.msra.mxu0 0.0
        %1477 = vmatprep.subr.mxu0 0.0
        %1478 = vmatpush1.xpose.msra.mxu0 0.0
        %1479 = vmatprep.subr.mxu0 0.0
        %1480 = vmatpush1.xpose.msra.mxu0 0.0
        %1481 = vmatprep.subr.mxu0 0.0
        %1482 = vmatpush1.xpose.msra.mxu0 0.0
        %1483 = vmatprep.subr.mxu0 0.0
        %1484 = vmatpush1.xpose.msra.mxu0 0.0
        %1485 = vmatprep.subr.mxu0 0.0
        %1486 = vmatpush1.xpose.msra.mxu0 0.0
        %1487 = vmatprep.subr.mxu0 0.0
        %1488 = vmatpush1.xpose.msra.mxu0 0.0
        %1489 = vmatprep.subr.mxu0 0.0
        %1490 = vmatpush1.xpose.msra.mxu0 0.0
        %1491 = vmatprep.subr.mxu0 0.0
        %1492 = vmatpush1.xpose.msra.mxu0 0.0
        %1493 = vmatprep.subr.mxu0 0.0
        %1494 = vmatpush1.xpose.msra.mxu0 0.0
        %1495 = vmatprep.subr.mxu0 0.0
        %1496 = vmatpush1.xpose.msra.mxu0 0.0
        %1497 = vmatprep.subr.mxu0 0.0
        %1498 = vmatpush1.xpose.msra.mxu0 0.0
        %1499 = vmatprep.subr.mxu0 0.0
        %1500 = vmatpush1.xpose.msra.mxu0 0.0
        %1501 = vmatprep.subr.mxu0 0.0
        %1502 = vmatpush1.xpose.msra.mxu0 0.0
        %1503 = vmatprep.subr.mxu0 0.0
        %1504 = vmatpush1.xpose.msra.mxu0 %v1471
        %1505 = vmatprep.subr.mxu0 0.0
        %1506 = vmatpush2.xpose.msra.mxu0 0.0
        %1507 = vmatprep.subr.mxu0 0.0
        %1508 = vmatpush2.xpose.msra.mxu0 0.0
        %1509 = vmatprep.subr.mxu0 0.0
        %1510 = vmatpush2.xpose.msra.mxu0 0.0
        %1511 = vmatprep.subr.mxu0 0.0
        %1512 = vmatpush2.xpose.msra.mxu0 0.0
        %1513 = vmatprep.subr.mxu0 0.0
        %1514 = vmatpush2.xpose.msra.mxu0 0.0
        %1515 = vmatprep.subr.mxu0 0.0
        %1516 = vmatpush2.xpose.msra.mxu0 0.0
        %1517 = vmatprep.subr.mxu0 0.0
        %1518 = vmatpush2.xpose.msra.mxu0 0.0
        %1519 = vmatprep.subr.mxu0 0.0
        %1520 = vmatpush2.xpose.msra.mxu0 0.0
        %1521 = vmatprep.subr.mxu0 0.0
        %1522 = vmatpush2.xpose.msra.mxu0 0.0
        %1523 = vmatprep.subr.mxu0 0.0
        %1524 = vmatpush2.xpose.msra.mxu0 0.0
        %1525 = vmatprep.subr.mxu0 0.0
        %1526 = vmatpush2.xpose.msra.mxu0 0.0
        %1527 = vmatprep.subr.mxu0 0.0
        %1528 = vmatpush2.xpose.msra.mxu0 0.0
        %1529 = vmatprep.subr.mxu0 0.0
        %1530 = vmatpush2.xpose.msra.mxu0 0.0
        %1531 = vmatprep.subr.mxu0 0.0
        %1532 = vmatpush2.xpose.msra.mxu0 0.0
        %1533 = vmatprep.subr.mxu0 0.0
        %1534 = vmatpush2.xpose.msra.mxu0 0.0
        %1535 = vmatprep.subr.mxu0 0.0
        %1536 = vmatpush2.xpose.msra.mxu0 0.0
        %1537 = vmatprep.mubr.f32.mxu0 0.0
        %1538 = vmatmul.mubr.f32.gmra.mxu0 %v1469
        %v1539 = vpop.f32.mrf.mxu0
        %v1540 = vadd.f32 0.0, %v1539
        %v1541 = vpop.f32.mrf.mxu0
        %1542 = vdwg.mxu0
        %v1543 = vmul.f32 %v1540, 0.17677669
        %v1544 = vadd.f32 %v1543, %v570
        %v1545 = vsel %vm822, %v1544, -inf
        %1546 = vmax.xlane.f32.xlu0 %v1545
        %v1547 = vpop.xlane.xlu0 %1546
        %v1548 = vsub.f32 %v1544, %v1547
        %v1549 = vmul.f32 %v1548, 1.442695
        %v1550 = vpow.pop %v1549
        %v1551 = vsel %vm822, %v1550, 0.0
        %1552 = vadd.xlane.f32.xlu0 %v1551
        %v1553 = vpop.xlane.xlu0 %1552
        %v1554 = vrcp.pop %v1553
        %v1555 = vmul.f32 %v1550, %v1554
        %1556 = vrot.lane.b32.xlu0 %v1463, 64
        %v1557 = vpop.permute.xlu0 %1556
        %v1560 = vsel %vm822, %v1555, 0
        %1562 = vmatprep.subr.mxu0 0.0
        %1563 = vmatpush1.msra.mxu0 0.0
        %1564 = vmatprep.subr.mxu0 0.0
        %1565 = vmatpush1.msra.mxu0 0.0
        %1566 = vmatprep.subr.mxu0 0.0
        %1567 = vmatpush1.msra.mxu0 0.0
        %1568 = vmatprep.subr.mxu0 0.0
        %1569 = vmatpush1.msra.mxu0 0.0
        %1570 = vmatprep.subr.mxu0 0.0
        %1571 = vmatpush1.msra.mxu0 0.0
        %1572 = vmatprep.subr.mxu0 0.0
        %1573 = vmatpush1.msra.mxu0 0.0
        %1574 = vmatprep.subr.mxu0 0.0
        %1575 = vmatpush1.msra.mxu0 0.0
        %1576 = vmatprep.subr.mxu0 0.0
        %1577 = vmatpush1.msra.mxu0 0.0
        %1578 = vmatprep.subr.mxu0 0.0
        %1579 = vmatpush1.msra.mxu0 0.0
        %1580 = vmatprep.subr.mxu0 0.0
        %1581 = vmatpush1.msra.mxu0 0.0
        %1582 = vmatprep.subr.mxu0 0.0
        %1583 = vmatpush1.msra.mxu0 0.0
        %1584 = vmatprep.subr.mxu0 0.0
        %1585 = vmatpush1.msra.mxu0 0.0
        %1586 = vmatprep.subr.mxu0 0.0
        %1587 = vmatpush1.msra.mxu0 0.0
        %1588 = vmatprep.subr.mxu0 0.0
        %1589 = vmatpush1.msra.mxu0 0.0
        %1590 = vmatprep.subr.mxu0 0.0
        %1591 = vmatpush1.msra.mxu0 0.0
        %1592 = vmatprep.subr.mxu0 0.0
        %1593 = vmatpush1.msra.mxu0 %v1557
        %1594 = vmatprep.subr.mxu0 0.0
        %1595 = vmatpush2.msra.mxu0 0.0
        %1596 = vmatprep.subr.mxu0 0.0
        %1597 = vmatpush2.msra.mxu0 0.0
        %1598 = vmatprep.subr.mxu0 0.0
        %1599 = vmatpush2.msra.mxu0 0.0
        %1600 = vmatprep.subr.mxu0 0.0
        %1601 = vmatpush2.msra.mxu0 0.0
        %1602 = vmatprep.subr.mxu0 0.0
        %1603 = vmatpush2.msra.mxu0 0.0
        %1604 = vmatprep.subr.mxu0 0.0
        %1605 = vmatpush2.msra.mxu0 0.0
        %1606 = vmatprep.subr.mxu0 0.0
        %1607 = vmatpush2.msra.mxu0 0.0
        %1608 = vmatprep.subr.mxu0 0.0
        %1609 = vmatpush2.msra.mxu0 0.0
        %1610 = vmatprep.subr.mxu0 0.0
        %1611 = vmatpush2.msra.mxu0 0.0
        %1612 = vmatprep.subr.mxu0 0.0
        %1613 = vmatpush2.msra.mxu0 0.0
        %1614 = vmatprep.subr.mxu0 0.0
        %1615 = vmatpush2.msra.mxu0 0.0
        %1616 = vmatprep.subr.mxu0 0.0
        %1617 = vmatpush2.msra.mxu0 0.0
        %1618 = vmatprep.subr.mxu0 0.0
        %1619 = vmatpush2.msra.mxu0 0.0
        %1620 = vmatprep.subr.mxu0 0.0
        %1621 = vmatpush2.msra.mxu0 0.0
        %1622 = vmatprep.subr.mxu0 0.0
        %1623 = vmatpush2.msra.mxu0 0.0
        %1624 = vmatprep.subr.mxu0 0.0
        %1625 = vmatpush2.msra.mxu0 0.0
        %1626 = vmatprep.mubr.f32.mxu0 0.0
        %1627 = vmatmul.mubr.f32.gmra.mxu0 %v1560
        %v1628 = vpop.f32.mrf.mxu0
        %v1629 = vadd.f32 %v1392, %v1628
        %v1630 = vpop.f32.mrf.mxu0
        %1631 = vdwg.mxu0
        %v1632 = vsel %vm585, %v1629, 0.0
        %1633 = vadd.xlane.f32.xlu0 %v1632
        %v1634 = vpop.xlane.xlu0 %1633
        %v1635 = vmul.f32 %v1634, %v913
        %v1636 = vsub.f32 %v1629, %v1635
        %v1637 = vmul.f32 %v1636, %v1636
        %v1638 = vsel %vm585, %v1637, 0.0
        %1639 = vadd.xlane.f32.xlu0 %v1638
        %v1640 = vpop.xlane.xlu0 %1639
        %v1641 = vmul.f32 %v1640, %v913
        %v1642 = vadd.f32 %v1641, 1e-05
        %v1643 = vrsqrt.pop %v1642
        %v1644 = vmul.f32 %v1636, %v1643
        %v1645 = vmul.f32 %v1644, %v928
        %v1646 = vadd.f32 %v1645, %v935
        %v1648 = vsel %vm585, %v1646, 0
        %1650 = vmatprep.subr.mxu0 0.0
        %1651 = vmatpush1.msra.mxu0 0.0
        %1652 = vmatprep.subr.mxu0 0.0
        %1653 = vmatpush1.msra.mxu0 0.0
        %1654 = vmatprep.subr.mxu0 0.0
        %1655 = vmatpush1.msra.mxu0 0.0
        %1656 = vmatprep.subr.mxu0 0.0
        %1657 = vmatpush1.msra.mxu0 0.0
        %1658 = vmatprep.subr.mxu0 0.0
        %1659 = vmatpush1.msra.mxu0 0.0
        %1660 = vmatprep.subr.mxu0 0.0
        %1661 = vmatpush1.msra.mxu0 0.0
        %1662 = vmatprep.subr.mxu0 0.0
        %1663 = vmatpush1.msra.mxu0 0.0
        %1664 = vmatprep.subr.mxu0 0.0
        %1665 = vmatpush1.msra.mxu0 0.0
        %1666 = vmatprep.subr.mxu0 0.0
        %1667 = vmatpush1.msra.mxu0 0.0
        %1668 = vmatprep.subr.mxu0 0.0
        %1669 = vmatpush1.msra.mxu0 0.0
        %1670 = vmatprep.subr.mxu0 0.0
        %1671 = vmatpush1.msra.mxu0 0.0
        %1672 = vmatprep.subr.mxu0 0.0
        %1673 = vmatpush1.msra.mxu0 0.0
        %1674 = vmatprep.subr.mxu0 0.0
        %1675 = vmatpush1.msra.mxu0 %v941
        %1676 = vmatprep.subr.mxu0 0.0
        %1677 = vmatpush1.msra.mxu0 %v940
        %1678 = vmatprep.subr.mxu0 0.0
        %1679 = vmatpush1.msra.mxu0 %v939
        %1680 = vmatprep.subr.mxu0 0.0
        %1681 = vmatpush1.msra.mxu0 %v938
        %1682 = vmatprep.subr.mxu0 0.0
        %1683 = vmatpush2.msra.mxu0 0.0
        %1684 = vmatprep.subr.mxu0 0.0
        %1685 = vmatpush2.msra.mxu0 0.0
        %1686 = vmatprep.subr.mxu0 0.0
        %1687 = vmatpush2.msra.mxu0 0.0
        %1688 = vmatprep.subr.mxu0 0.0
        %1689 = vmatpush2.msra.mxu0 0.0
        %1690 = vmatprep.subr.mxu0 0.0
        %1691 = vmatpush2.msra.mxu0 0.0
        %1692 = vmatprep.subr.mxu0 0.0
        %1693 = vmatpush2.msra.mxu0 0.0
        %1694 = vmatprep.subr.mxu0 0.0
        %1695 = vmatpush2.msra.mxu0 0.0
        %1696 = vmatprep.subr.mxu0 0.0
        %1697 = vmatpush2.msra.mxu0 0.0
        %1698 = vmatprep.subr.mxu0 0.0
        %1699 = vmatpush2.msra.mxu0 0.0
        %1700 = vmatprep.subr.mxu0 0.0
        %1701 = vmatpush2.msra.mxu0 0.0
        %1702 = vmatprep.subr.mxu0 0.0
        %1703 = vmatpush2.msra.mxu0 0.0
        %1704 = vmatprep.subr.mxu0 0.0
        %1705 = vmatpush2.msra.mxu0 0.0
        %1706 = vmatprep.subr.mxu0 0.0
        %1707 = vmatpush2.msra.mxu0 0.0
        %1708 = vmatprep.subr.mxu0 0.0
        %1709 = vmatpush2.msra.mxu0 0.0
        %1710 = vmatprep.subr.mxu0 0.0
        %1711 = vmatpush2.msra.mxu0 0.0
        %1712 = vmatprep.subr.mxu0 0.0
        %1713 = vmatpush2.msra.mxu0 0.0
        %1714 = vmatprep.mubr.f32.mxu0 0.0
        %1715 = vmatmul.mubr.f32.gmra.mxu0 %v1648
        %v1716 = vpop.f32.mrf.mxu0
        %v1717 = vadd.f32 %v947, %v1716
        %v1718 = vpop.f32.mrf.mxu0
        %1719 = vdwg.mxu0
        %v1721 = vsel %vm585, %v1717, 0
        %1723 = vmatprep.subr.mxu0 0.0
        %1724 = vmatpush1.xpose.msra.mxu0 0.0
        %1725 = vmatprep.subr.mxu0 0.0
        %1726 = vmatpush1.xpose.msra.mxu0 0.0
        %1727 = vmatprep.subr.mxu0 0.0
        %1728 = vmatpush1.xpose.msra.mxu0 0.0
        %1729 = vmatprep.subr.mxu0 0.0
        %1730 = vmatpush1.xpose.msra.mxu0 0.0
        %1731 = vmatprep.subr.mxu0 0.0
        %1732 = vmatpush1.xpose.msra.mxu0 0.0
        %1733 = vmatprep.subr.mxu0 0.0
        %1734 = vmatpush1.xpose.msra.mxu0 0.0
        %1735 = vmatprep.subr.mxu0 0.0
        %1736 = vmatpush1.xpose.msra.mxu0 0.0
        %1737 = vmatprep.subr.mxu0 0.0
        %1738 = vmatpush1.xpose.msra.mxu0 0.0
        %1739 = vmatprep.subr.mxu0 0.0
        %1740 = vmatpush1.xpose.msra.mxu0 0.0
        %1741 = vmatprep.subr.mxu0 0.0
        %1742 = vmatpush1.xpose.msra.mxu0 0.0
        %1743 = vmatprep.subr.mxu0 0.0
        %1744 = vmatpush1.xpose.msra.mxu0 0.0
        %1745 = vmatprep.subr.mxu0 0.0
        %1746 = vmatpush1.xpose.msra.mxu0 0.0
        %1747 = vmatprep.subr.mxu0 0.0
        %1748 = vmatpush1.xpose.msra.mxu0 0.0
        %1749 = vmatprep.subr.mxu0 0.0
        %1750 = vmatpush1.xpose.msra.mxu0 0.0
        %1751 = vmatprep.subr.mxu0 0.0
        %1752 = vmatpush1.xpose.msra.mxu0 0.0
        %1753 = vmatprep.subr.mxu0 0.0
        %1754 = vmatpush1.xpose.msra.mxu0 %v1026
        %1755 = vmatprep.subr.mxu0 0.0
        %1756 = vmatpush2.xpose.msra.mxu0 0.0
        %1757 = vmatprep.subr.mxu0 0.0
        %1758 = vmatpush2.xpose.msra.mxu0 0.0
        %1759 = vmatprep.subr.mxu0 0.0
        %1760 = vmatpush2.xpose.msra.mxu0 0.0
        %1761 = vmatprep.subr.mxu0 0.0
        %1762 = vmatpush2.xpose.msra.mxu0 0.0
        %1763 = vmatprep.subr.mxu0 0.0
        %1764 = vmatpush2.xpose.msra.mxu0 0.0
        %1765 = vmatprep.subr.mxu0 0.0
        %1766 = vmatpush2.xpose.msra.mxu0 0.0
        %1767 = vmatprep.subr.mxu0 0.0
        %1768 = vmatpush2.xpose.msra.mxu0 0.0
        %1769 = vmatprep.subr.mxu0 0.0
        %1770 = vmatpush2.xpose.msra.mxu0 0.0
        %1771 = vmatprep.subr.mxu0 0.0
        %1772 = vmatpush2.xpose.msra.mxu0 0.0
        %1773 = vmatprep.subr.mxu0 0.0
        %1774 = vmatpush2.xpose.msra.mxu0 0.0
        %1775 = vmatprep.subr.mxu0 0.0
        %1776 = vmatpush2.xpose.msra.mxu0 0.0
        %1777 = vmatprep.subr.mxu0 0.0
        %1778 = vmatpush2.xpose.msra.mxu0 0.0
        %1779 = vmatprep.subr.mxu0 0.0
        %1780 = vmatpush2.xpose.msra.mxu0 0.0
        %1781 = vmatprep.subr.mxu0 0.0
        %1782 = vmatpush2.xpose.msra.mxu0 0.0
        %1783 = vmatprep.subr.mxu0 0.0
        %1784 = vmatpush2.xpose.msra.mxu0 0.0
        %1785 = vmatprep.subr.mxu0 0.0
        %1786 = vmatpush2.xpose.msra.mxu0 0.0
        %1787 = vmatprep.mubr.f32.mxu0 0.0
        %1788 = vmatmul.mubr.f32.gmra.mxu0 %v1721
        %v1789 = vpop.f32.mrf.mxu0
        %v1790 = vadd.f32 0.0, %v1789
        %v1791 = vpop.f32.mrf.mxu0
        %1792 = vdwg.mxu0
        %v1793 = vmul.f32 %v1790, 0.17677669
        %v1794 = vadd.f32 %v1793, %v571
        %v1795 = vsel %vm822, %v1794, -inf
        %1796 = vmax.xlane.f32.xlu0 %v1795
        %v1797 = vpop.xlane.xlu0 %1796
        %v1798 = vsub.f32 %v1794, %v1797
        %v1799 = vmul.f32 %v1798, 1.442695
        %v1800 = vpow.pop %v1799
        %v1801 = vsel %vm822, %v1800, 0.0
        %1802 = vadd.xlane.f32.xlu0 %v1801
        %v1803 = vpop.xlane.xlu0 %1802
        %v1804 = vrcp.pop %v1803
        %v1805 = vmul.f32 %v1800, %v1804
        %v1807 = vsel %vm822, %v1805, 0
        %1809 = vmatprep.subr.mxu0 0.0
        %1810 = vmatpush1.msra.mxu0 0.0
        %1811 = vmatprep.subr.mxu0 0.0
        %1812 = vmatpush1.msra.mxu0 0.0
        %1813 = vmatprep.subr.mxu0 0.0
        %1814 = vmatpush1.msra.mxu0 0.0
        %1815 = vmatprep.subr.mxu0 0.0
        %1816 = vmatpush1.msra.mxu0 0.0
        %1817 = vmatprep.subr.mxu0 0.0
        %1818 = vmatpush1.msra.mxu0 0.0
        %1819 = vmatprep.subr.mxu0 0.0
        %1820 = vmatpush1.msra.mxu0 0.0
        %1821 = vmatprep.subr.mxu0 0.0
        %1822 = vmatpush1.msra.mxu0 0.0
        %1823 = vmatprep.subr.mxu0 0.0
        %1824 = vmatpush1.msra.mxu0 0.0
        %1825 = vmatprep.subr.mxu0 0.0
        %1826 = vmatpush1.msra.mxu0 0.0
        %1827 = vmatprep.subr.mxu0 0.0
        %1828 = vmatpush1.msra.mxu0 0.0
        %1829 = vmatprep.subr.mxu0 0.0
        %1830 = vmatpush1.msra.mxu0 0.0
        %1831 = vmatprep.subr.mxu0 0.0
        %1832 = vmatpush1.msra.mxu0 0.0
        %1833 = vmatprep.subr.mxu0 0.0
        %1834 = vmatpush1.msra.mxu0 0.0
        %1835 = vmatprep.subr.mxu0 0.0
        %1836 = vmatpush1.msra.mxu0 0.0
        %1837 = vmatprep.subr.mxu0 0.0
        %1838 = vmatpush1.msra.mxu0 0.0
        %1839 = vmatprep.subr.mxu0 0.0
        %1840 = vmatpush1.msra.mxu0 %v1112
        %1841 = vmatprep.subr.mxu0 0.0
        %1842 = vmatpush2.msra.mxu0 0.0
        %1843 = vmatprep.subr.mxu0 0.0
        %1844 = vmatpush2.msra.mxu0 0.0
        %1845 = vmatprep.subr.mxu0 0.0
        %1846 = vmatpush2.msra.mxu0 0.0
        %1847 = vmatprep.subr.mxu0 0.0
        %1848 = vmatpush2.msra.mxu0 0.0
        %1849 = vmatprep.subr.mxu0 0.0
        %1850 = vmatpush2.msra.mxu0 0.0
        %1851 = vmatprep.subr.mxu0 0.0
        %1852 = vmatpush2.msra.mxu0 0.0
        %1853 = vmatprep.subr.mxu0 0.0
        %1854 = vmatpush2.msra.mxu0 0.0
        %1855 = vmatprep.subr.mxu0 0.0
        %1856 = vmatpush2.msra.mxu0 0.0
        %1857 = vmatprep.subr.mxu0 0.0
        %1858 = vmatpush2.msra.mxu0 0.0
        %1859 = vmatprep.subr.mxu0 0.0
        %1860 = vmatpush2.msra.mxu0 0.0
        %1861 = vmatprep.subr.mxu0 0.0
        %1862 = vmatpush2.msra.mxu0 0.0
        %1863 = vmatprep.subr.mxu0 0.0
        %1864 = vmatpush2.msra.mxu0 0.0
        %1865 = vmatprep.subr.mxu0 0.0
        %1866 = vmatpush2.msra.mxu0 0.0
        %1867 = vmatprep.subr.mxu0 0.0
        %1868 = vmatpush2.msra.mxu0 0.0
        %1869 = vmatprep.subr.mxu0 0.0
        %1870 = vmatpush2.msra.mxu0 0.0
        %1871 = vmatprep.subr.mxu0 0.0
        %1872 = vmatpush2.msra.mxu0 0.0
        %1873 = vmatprep.mubr.f32.mxu0 0.0
        %1874 = vmatmul.mubr.f32.gmra.mxu0 %v1807
        %v1875 = vpop.f32.mrf.mxu0
        %v1876 = vadd.f32 0.0, %v1875
        %v1877 = vpop.f32.mrf.mxu0
        %1878 = vdwg.mxu0
        %v1879 = vadd.f32 %v1876, %v1646
        %v1880 = vsel %vm585, %v1879, 0.0
        %1881 = vadd.xlane.f32.xlu0 %v1880
        %v1882 = vpop.xlane.xlu0 %1881
        %v1883 = vmul.f32 %v1882, %v913
        %v1884 = vsub.f32 %v1879, %v1883
        %v1885 = vmul.f32 %v1884, %v1884
        %v1886 = vsel %vm585, %v1885, 0.0
        %1887 = vadd.xlane.f32.xlu0 %v1886
        %v1888 = vpop.xlane.xlu0 %1887
        %v1889 = vmul.f32 %v1888, %v913
        %v1890 = vadd.f32 %v1889, 1e-05
        %v1891 = vrsqrt.pop %v1890
        %v1892 = vmul.f32 %v1884, %v1891
        %v1893 = vmul.f32 %v1892, %v928
        %v1894 = vadd.f32 %v1893, %v935
        %v1896 = vsel %vm585, %v1876, 0
        %1898 = vmatprep.subr.mxu0 0.0
        %1899 = vmatpush1.msra.mxu0 0.0
        %1900 = vmatprep.subr.mxu0 0.0
        %1901 = vmatpush1.msra.mxu0 0.0
        %1902 = vmatprep.subr.mxu0 0.0
        %1903 = vmatpush1.msra.mxu0 0.0
        %1904 = vmatprep.subr.mxu0 0.0
        %1905 = vmatpush1.msra.mxu0 0.0
        %1906 = vmatprep.subr.mxu0 0.0
        %1907 = vmatpush1.msra.mxu0 0.0
        %1908 = vmatprep.subr.mxu0 0.0
        %1909 = vmatpush1.msra.mxu0 0.0
        %1910 = vmatprep.subr.mxu0 0.0
        %1911 = vmatpush1.msra.mxu0 0.0
        %1912 = vmatprep.subr.mxu0 0.0
        %1913 = vmatpush1.msra.mxu0 0.0
        %1914 = vmatprep.subr.mxu0 0.0
        %1915 = vmatpush1.msra.mxu0 0.0
        %1916 = vmatprep.subr.mxu0 0.0
        %1917 = vmatpush1.msra.mxu0 0.0
        %1918 = vmatprep.subr.mxu0 0.0
        %1919 = vmatpush1.msra.mxu0 0.0
        %1920 = vmatprep.subr.mxu0 0.0
        %1921 = vmatpush1.msra.mxu0 0.0
        %1922 = vmatprep.subr.mxu0 0.0
        %1923 = vmatpush1.msra.mxu0 %v1206
        %1924 = vmatprep.subr.mxu0 0.0
        %1925 = vmatpush1.msra.mxu0 %v1205
        %1926 = vmatprep.subr.mxu0 0.0
        %1927 = vmatpush1.msra.mxu0 %v1204
        %1928 = vmatprep.subr.mxu0 0.0
        %1929 = vmatpush1.msra.mxu0 %v1203
        %1930 = vmatprep.subr.mxu0 0.0
        %1931 = vmatpush2.msra.mxu0 0.0
        %1932 = vmatprep.subr.mxu0 0.0
        %1933 = vmatpush2.msra.mxu0 0.0
        %1934 = vmatprep.subr.mxu0 0.0
        %1935 = vmatpush2.msra.mxu0 0.0
        %1936 = vmatprep.subr.mxu0 0.0
        %1937 = vmatpush2.msra.mxu0 0.0
        %1938 = vmatprep.subr.mxu0 0.0
        %1939 = vmatpush2.msra.mxu0 0.0
        %1940 = vmatprep.subr.mxu0 0.0
        %1941 = vmatpush2.msra.mxu0 0.0
        %1942 = vmatprep.subr.mxu0 0.0
        %1943 = vmatpush2.msra.mxu0 0.0
        %1944 = vmatprep.subr.mxu0 0.0
        %1945 = vmatpush2.msra.mxu0 0.0
        %1946 = vmatprep.subr.mxu0 0.0
        %1947 = vmatpush2.msra.mxu0 0.0
        %1948 = vmatprep.subr.mxu0 0.0
        %1949 = vmatpush2.msra.mxu0 0.0
        %1950 = vmatprep.subr.mxu0 0.0
        %1951 = vmatpush2.msra.mxu0 0.0
        %1952 = vmatprep.subr.mxu0 0.0
        %1953 = vmatpush2.msra.mxu0 0.0
        %1954 = vmatprep.subr.mxu0 0.0
        %1955 = vmatpush2.msra.mxu0 0.0
        %1956 = vmatprep.subr.mxu0 0.0
        %1957 = vmatpush2.msra.mxu0 0.0
        %1958 = vmatprep.subr.mxu0 0.0
        %1959 = vmatpush2.msra.mxu0 0.0
        %1960 = vmatprep.subr.mxu0 0.0
        %1961 = vmatpush2.msra.mxu0 0.0
        %1962 = vmatprep.mubr.f32.mxu0 0.0
        %1963 = vmatmul.mubr.f32.gmra.mxu0 %v1896
        %v1964 = vpop.f32.mrf.mxu0
        %v1965 = vadd.f32 %v1212, %v1964
        %v1966 = vpop.f32.mrf.mxu0
        %1967 = vdwg.mxu0
        %v1968 = vmax.f32 %v1965, 0.0
        %v1970 = vsel %vm1303, %v1968, 0
        %1972 = vmatprep.subr.mxu0 0.0
        %1973 = vmatpush1.msra.mxu0 0.0
        %1974 = vmatprep.subr.mxu0 0.0
        %1975 = vmatpush1.msra.mxu0 0.0
        %1976 = vmatprep.subr.mxu0 0.0
        %1977 = vmatpush1.msra.mxu0 0.0
        %1978 = vmatprep.subr.mxu0 0.0
        %1979 = vmatpush1.msra.mxu0 0.0
        %1980 = vmatprep.subr.mxu0 0.0
        %1981 = vmatpush1.msra.mxu0 0.0
        %1982 = vmatprep.subr.mxu0 0.0
        %1983 = vmatpush1.msra.mxu0 0.0
        %1984 = vmatprep.subr.mxu0 0.0
        %1985 = vmatpush1.msra.mxu0 0.0
        %1986 = vmatprep.subr.mxu0 0.0
        %1987 = vmatpush1.msra.mxu0 0.0
        %1988 = vmatprep.subr.mxu0 0.0
        %1989 = vmatpush1.msra.mxu0 %v1295
        %1990 = vmatprep.subr.mxu0 0.0
        %1991 = vmatpush1.msra.mxu0 %v1294
        %1992 = vmatprep.subr.mxu0 0.0
        %1993 = vmatpush1.msra.mxu0 %v1293
        %1994 = vmatprep.subr.mxu0 0.0
        %1995 = vmatpush1.msra.mxu0 %v1292
        %1996 = vmatprep.subr.mxu0 0.0
        %1997 = vmatpush1.msra.mxu0 %v1291
        %1998 = vmatprep.subr.mxu0 0.0
        %1999 = vmatpush1.msra.mxu0 %v1290
        %2000 = vmatprep.subr.mxu0 0.0
        %2001 = vmatpush1.msra.mxu0 %v1289
        %2002 = vmatprep.subr.mxu0 0.0
        %2003 = vmatpush1.msra.mxu0 %v1288
        %2004 = vmatprep.subr.mxu0 0.0
        %2005 = vmatpush2.msra.mxu0 0.0
        %2006 = vmatprep.subr.mxu0 0.0
        %2007 = vmatpush2.msra.mxu0 0.0
        %2008 = vmatprep.subr.mxu0 0.0
        %2009 = vmatpush2.msra.mxu0 0.0
        %2010 = vmatprep.subr.mxu0 0.0
        %2011 = vmatpush2.msra.mxu0 0.0
        %2012 = vmatprep.subr.mxu0 0.0
        %2013 = vmatpush2.msra.mxu0 0.0
        %2014 = vmatprep.subr.mxu0 0.0
        %2015 = vmatpush2.msra.mxu0 0.0
        %2016 = vmatprep.subr.mxu0 0.0
        %2017 = vmatpush2.msra.mxu0 0.0
        %2018 = vmatprep.subr.mxu0 0.0
        %2019 = vmatpush2.msra.mxu0 0.0
        %2020 = vmatprep.subr.mxu0 0.0
        %2021 = vmatpush2.msra.mxu0 0.0
        %2022 = vmatprep.subr.mxu0 0.0
        %2023 = vmatpush2.msra.mxu0 0.0
        %2024 = vmatprep.subr.mxu0 0.0
        %2025 = vmatpush2.msra.mxu0 0.0
        %2026 = vmatprep.subr.mxu0 0.0
        %2027 = vmatpush2.msra.mxu0 0.0
        %2028 = vmatprep.subr.mxu0 0.0
        %2029 = vmatpush2.msra.mxu0 0.0
        %2030 = vmatprep.subr.mxu0 0.0
        %2031 = vmatpush2.msra.mxu0 0.0
        %2032 = vmatprep.subr.mxu0 0.0
        %2033 = vmatpush2.msra.mxu0 0.0
        %2034 = vmatprep.subr.mxu0 0.0
        %2035 = vmatpush2.msra.mxu0 0.0
        %2036 = vmatprep.mubr.f32.mxu0 0.0
        %2037 = vmatmul.mubr.f32.gmra.mxu0 %v1970
        %v2038 = vpop.f32.mrf.mxu0
        %v2039 = vadd.f32 %v1301, %v2038
        %v2040 = vpop.f32.mrf.mxu0
        %2041 = vdwg.mxu0
        %v2042 = vadd.f32 %v2039, %v1894
        %v2043 = vsel %vm585, %v2042, 0.0
        %2044 = vadd.xlane.f32.xlu0 %v2043
        %v2045 = vpop.xlane.xlu0 %2044
        %v2046 = vmul.f32 %v2045, %v913
        %v2047 = vsub.f32 %v2042, %v2046
        %v2048 = vmul.f32 %v2047, %v2047
        %v2049 = vsel %vm585, %v2048, 0.0
        %2050 = vadd.xlane.f32.xlu0 %v2049
        %v2051 = vpop.xlane.xlu0 %2050
        %v2052 = vmul.f32 %v2051, %v913
        %v2053 = vadd.f32 %v2052, 1e-05
        %v2054 = vrsqrt.pop %v2053
        %v2055 = vmul.f32 %v2047, %v2054
        %v2056 = vmul.f32 %v2055, %v928
        %v2057 = vadd.f32 %v2056, %v935
        %2058 = vst.msk [vmem:[%s551] sm:$0xff] %vm585, %v2057
        %s2059 = sand.u32 %s394, 1
        %s2060 = scalar_lea.sflag [#allocation3], %s2059
        %s2061 = sand.u32 %s394, 1
        %s2062 = smul.addr %s2061, 8
        %s2063 = scalar_lea.vmem [#allocation2], %s2062
        // Predicated region
        $region85: #{decoder_forward.1} parent=83 // pred_check
          %p2064 = pneg %p404
        $region86: #{decoder_forward.1} parent=83 // pred_check_branch
          %2066 = sbr.rel (%p2064) target = $region88
        $region87: #{decoder_forward.1} parent=83 // pred_region
          %s2068 = ssub.s32 128, 128
          %2069 = vsyncadd %s2060, %s2068
          %s2070 = smul.addr %s30, 128
          %s2071 = scalar_lea.hbm %s16, %s2070
          %s2073 = sshll.u32 %s2063, 4
          %s2074 = int_to_ptr.vmem [resolvable:$true] %s2073
          %2076 = dma.vmem_to_hbm [thread:$0]  %s2074, 128, %s2071, %s2060
        $region88: #{decoder_forward.1} parent=83 // pred_fallthru
          _
      $region84: #{decoder_forward.1} parent=5 // pred_fallthru
        _
      %p2077 = scmp.le.s32.totalorder 2, %s25
      // Predicated region
      $region89: #{decoder_forward.1} parent=5 // pred_check
        %p2078 = pneg %p2077
      $region90: #{decoder_forward.1} parent=5 // pred_check_branch
        %2080 = sbr.rel (%p2078) target = $region92
      $region91: #{decoder_forward.1} parent=5 // pred_region
        %s2081 = ssub.s32 %s25, 2
        // Predicated region
        $region93: #{decoder_forward.1} parent=91 // pred_check
          %p2082 = pneg %p410
        $region94: #{decoder_forward.1} parent=91 // pred_check_branch
          %2084 = sbr.rel (%p2082) target = $region96
        $region95: #{decoder_forward.1} parent=91 // pred_region
          %s2085 = sand.u32 %s395, 1
          %s2086 = scalar_lea.sflag [#allocation3], %s2085
          %s2087 = sand.u32 %s395, 1
          %s2088 = smul.addr %s2087, 8
          %s2089 = scalar_lea.vmem [#allocation2], %s2088
          %2090 = dma.done %s2086, 128
        $region96: #{decoder_forward.1} parent=91 // pred_fallthru
          _
      $region92: #{decoder_forward.1} parent=5 // pred_fallthru
        _
    $region6: #{decoder_forward.1} parent=1 // loop_footer
      %s29 = sadd.s32 1, %s25
    $region7: #{decoder_forward.1} parent=1 // loop_footer_branch
      %24 = sbr.rel target = $region3
    $region8: #{decoder_forward.1} parent=1 // loop_exit
      _
    %2091 = vsyncpa [#allocation3], 1
    %s2092 = scalar_lea.sflag [#allocation3], 1
    %2093 = vsyncpa %s2092, 1

</llo_original>
